<compile_context>
chip_gen: v7x
topology: tpu7x:2x2x1
jax: 0.10.0
libtpu: 0.0.40
codegen_flags: <defaults>
</compile_context>

<pallas_src>
import functools

import jax
import jax.numpy as jnp
from jax.experimental import pallas as pl
from jax.experimental.pallas import tpu as pltpu


def _round_up(x, m):
    return (x + m - 1) // m * m


def conv_module_kernel(lens_ref,                 # SMEM (B,) int32 (scalar prefetch)
                       xl_ref, xc_ref, xr_ref,   # (Pa,C), (tq,C), (Pa,C) halo'd window
                       w1_ref, b1_ref,           # (C, 2C) bf16, (1, 2C) f32 (fused GLU)
                       wdw_ref,                  # (K, C) f32 (bn_scale folded in)
                       bnb_ref,                  # (1, C) f32 (bn shift)
                       w2_ref, b2_ref,           # (C, C) bf16, (1, C) f32
                       o_ref,                    # (tq, C)
                       *, T, tq, K, Pa):
    C = o_ref.shape[-1]
    P = (K - 1) // 2
    Wa = tq + 2 * Pa                              # halo'd window length

    b = pl.program_id(0)
    t = pl.program_id(1)
    t0 = pl.multiple_of(t * tq, tq)               # global start row of this tile
    valid_len = lens_ref[b]

    # Assemble the halo'd window; x only feeds the MXU, so work in bf16.
    xw = jnp.concatenate([xl_ref[...], xc_ref[...], xr_ref[...]],
                         axis=0).astype(jnp.bfloat16)            # (Wa, C)

    # Global (unpadded) time index of each window row.
    grow = t0 - Pa + jax.lax.broadcasted_iota(jnp.int32, (Wa, 1), 0)
    in_mask = (grow < valid_len)                                  # masked_fill before pw1
    conv_mask = jnp.logical_and(grow >= 0, grow < T)              # SAME zero-pad + clamped halos

    xm = xw * in_mask.astype(jnp.bfloat16)

    # Pointwise conv 1 (C -> 2C) fused with GLU: one bf16 MXU matmul, f32 acc.
    h = jnp.dot(xm, w1_ref[...], preferred_element_type=jnp.float32) + b1_ref[...]
    g = h[:, :C] * jax.nn.sigmoid(h[:, C:])                       # GLU, (Wa, C) f32
    g = g * conv_mask.astype(jnp.float32)                         # zero halo / out-of-range rows

    # Depthwise conv along time: K static shifted slices of the window.
    wdw = wdw_ref[...]                                            # (K, C)
    base = Pa - P
    acc = g[base: base + tq, :] * wdw[0:1, :]
    for k in range(1, K):                                         # K small & static
        acc = acc + g[base + k: base + k + tq, :] * wdw[k:k + 1, :]

    # BatchNorm (eval; scale already folded into wdw) + Swish, all f32.
    y = acc + bnb_ref[...]
    z = y * jax.nn.sigmoid(y)

    # Pointwise conv 2 (C -> C): bf16 MXU matmul, f32 acc; dropout = identity (eval).
    out = jnp.dot(z.astype(jnp.bfloat16), w2_ref[...],
                  preferred_element_type=jnp.float32) + b2_ref[...]

    # Final masked_fill on the tq output rows.
    out_mask = (t0 + jax.lax.broadcasted_iota(jnp.int32, (tq, 1), 0)) < valid_len
    o_ref[...] = (out * out_mask.astype(jnp.float32)).astype(o_ref.dtype)


def conv_module_pallas(x, mask_pad, params, *, tq=None, out_dtype=jnp.float32):
    """x: (B, T, C) float32/bfloat16, mask_pad: (B, 1, T) bool (prefix padding mask).

    Returns (B, T, C) in out_dtype, matching ConvModule.forward in eval mode.
    """
    B, T, C = x.shape
    K = params["wdw"].shape[0]
    assert K % 2 == 1, "kernel_size must be odd for SAME padding"
    P = (K - 1) // 2
    Pa = _round_up(max(P, 1), 16)                 # halo rows, bf16-sublane aligned
    if tq is None:
        tq = min(T, 256)                          # 256-512 preferred where T allows
    assert C % 128 == 0, "C must be a multiple of 128 for lane-dense blocks"
    assert tq % Pa == 0 and T % tq == 0 and T % Pa == 0, \
        "time tile must be a multiple of the halo size and divide T"
    NT = T // tq
    r = tq // Pa
    nblk_halo = T // Pa
    Wa = tq + 2 * Pa

    # Prefix padding mask -> per-sequence valid length (scalar-prefetched to SMEM).
    valid_lens = jnp.sum(mask_pad[:, 0, :].astype(jnp.int32), axis=-1)

    # Halo'd time tiling: center block plus clamped neighbor halo blocks.
    # Clamped (duplicated) rows at the sequence ends are zeroed by conv_mask.
    center_map = lambda b, t, lens: (b, t, 0)
    left_map = lambda b, t, lens: (b, jnp.maximum(t * r - 1, 0), 0)
    right_map = lambda b, t, lens: (b, jnp.minimum((t + 1) * r, nblk_halo - 1), 0)
    wspec = lambda shape: pl.BlockSpec(shape, lambda b, t, lens: (0, 0))

    kernel = functools.partial(conv_module_kernel, T=T, tq=tq, K=K, Pa=Pa)

    # Advisory cost estimate (helps XLA schedule around the custom call).
    x_bytes = jnp.dtype(x.dtype).itemsize
    out_bytes = jnp.dtype(out_dtype).itemsize
    flops_tile = (2 * Wa * C * 2 * C          # pw1 + GLU matmul
                  + 6 * Wa * C                # GLU mul / masks
                  + 2 * K * tq * C            # depthwise MAC
                  + 4 * tq * C                # BN + swish
                  + 2 * tq * C * C)           # pw2 matmul
    transc_tile = Wa * C + tq * C             # GLU sigmoid + swish sigmoid
    weight_bytes = (C * 2 * C + C * C) * 2 + (2 * C + K * C + 2 * C) * 4
    cost = pl.CostEstimate(
        flops=B * NT * flops_tile,
        transcendentals=B * NT * transc_tile,
        bytes_accessed=B * NT * Wa * C * x_bytes + B * T * C * out_bytes + weight_bytes)

    return pl.pallas_call(
        kernel,
        out_shape=jax.ShapeDtypeStruct((B, T, C), out_dtype),
        grid_spec=pltpu.PrefetchScalarGridSpec(
            num_scalar_prefetch=1,
            grid=(B, NT),
            in_specs=[
                pl.BlockSpec((None, Pa, C), left_map),     # x left halo
                pl.BlockSpec((None, tq, C), center_map),   # x center tile
                pl.BlockSpec((None, Pa, C), right_map),    # x right halo
                wspec((C, 2 * C)),    # fused GLU weight (bf16)
                wspec((1, 2 * C)),    # fused GLU bias
                wspec((K, C)),        # depthwise taps (bn_scale folded)
                wspec((1, C)),        # bn shift
                wspec((C, C)),        # pw2 weight (bf16)
                wspec((1, C)),        # pw2 bias
            ],
            out_specs=pl.BlockSpec((None, tq, C), center_map),
        ),
        compiler_params=pltpu.CompilerParams(
            dimension_semantics=("parallel", "parallel"),
            vmem_limit_bytes=32 * 1024 * 1024),
        cost_estimate=cost,
    )(valid_lens, x, x, x,
      params["w1"], params["b1"], params["wdw"], params["bn_shift"],
      params["w2"], params["b2"])


def init_params(key, C, K, eps=1e-5):
    """Deterministic synthetic parameters, shaped like the PyTorch module."""
    ks = jax.random.split(key, 9)
    s = 0.1
    # PointwiseConv1d #1: torch weight (2C, C, 1), bias (2C,)
    w1 = jax.random.normal(ks[0], (2 * C, C), jnp.float32) * s
    b1 = jax.random.normal(ks[1], (2 * C,), jnp.float32) * s
    # DepthwiseConv1d: torch weight (C, 1, K), no bias
    w_dw = jax.random.normal(ks[2], (C, K), jnp.float32) * s
    # BatchNorm1d (eval): gamma, beta, running stats
    gamma = 1.0 + 0.1 * jax.random.normal(ks[3], (C,), jnp.float32)
    beta = 0.1 * jax.random.normal(ks[4], (C,), jnp.float32)
    run_mean = 0.1 * jax.random.normal(ks[5], (C,), jnp.float32)
    run_var = jnp.abs(1.0 + 0.1 * jax.random.normal(ks[6], (C,), jnp.float32))
    # PointwiseConv1d #2: torch weight (C, C, 1), bias (C,)
    w2 = jax.random.normal(ks[7], (C, C), jnp.float32) * s
    b2 = jax.random.normal(ks[8], (C,), jnp.float32) * s

    bn_scale = gamma / jnp.sqrt(run_var + eps)
    bn_shift = beta - run_mean * bn_scale

    # Kernel-ready layout: channels last, matmul-ready transposes, GLU halves
    # concatenated on the output axis ([:, :C] = out half, [:, C:] = gate half),
    # bn_scale folded into the depthwise taps, matmul weights in bf16.
    return {
        "w1": w1.T.astype(jnp.bfloat16),                     # (C, 2C)
        "b1": b1.reshape(1, 2 * C),                          # (1, 2C) f32
        "wdw": w_dw.T * bn_scale[None, :],                   # (K, C)  f32
        "bn_shift": bn_shift.reshape(1, C),                  # (1, C)  f32
        "w2": w2.T.astype(jnp.bfloat16),                     # (C, C)
        "b2": b2.reshape(1, C),                              # (1, C)  f32
    }


def conv_module_ref(x, mask_pad, params):
    """Pure-JAX reference (same math, incl. bf16 matmul operands)."""
    B, T, C = x.shape
    K = params["wdw"].shape[0]
    P = (K - 1) // 2
    m = jnp.transpose(mask_pad, (0, 2, 1))                       # (B, T, 1) bool
    xm = (x.astype(jnp.bfloat16)
          * m.astype(jnp.bfloat16))
    h = jnp.dot(xm, params["w1"],
                preferred_element_type=jnp.float32) + params["b1"]
    g = h[..., :C] * jax.nn.sigmoid(h[..., C:])
    gp = jnp.pad(g, ((0, 0), (P, P), (0, 0)))
    acc = jnp.zeros_like(g)
    for k in range(K):
        acc = acc + gp[:, k:k + T, :] * params["wdw"][k][None, None, :]
    y = acc + params["bn_shift"]
    z = y * jax.nn.sigmoid(y)
    out = jnp.dot(z.astype(jnp.bfloat16), params["w2"],
                  preferred_element_type=jnp.float32) + params["b2"]
    return out * m.astype(jnp.float32)


if __name__ == "__main__":
    # Small but lane-dense demo shapes (C multiple of 128; kernel_size odd).
    B, T, C, K = 2, 64, 128, 7
    tq = 32   # small demo tile; real runs should use the 256+ default

    key = jax.random.PRNGKey(0)
    k_x, k_p = jax.random.split(key)

    # bf16 input halves the dominant HBM read of this memory-bound kernel.
    x = jax.random.normal(k_x, (B, T, C), jnp.float32).astype(jnp.bfloat16)
    # mask_pad: (B, 1, T) bool; second sequence has 9 padded frames at the end
    valid_lens = jnp.array([T, T - 9], dtype=jnp.int32)
    mask_pad = (jnp.arange(T)[None, None, :] < valid_lens[:, None, None])

    params = init_params(k_p, C, K)

    out = conv_module_pallas(x, mask_pad, params, tq=tq)
    out = jax.block_until_ready(out)

    ref = conv_module_ref(x, mask_pad, params)
    assert out.shape == (B, T, C)
    max_err = float(jnp.max(jnp.abs(out - ref)))
    assert jnp.allclose(out, ref, atol=2e-3, rtol=2e-3), f"mismatch vs reference: {max_err}"

    print("KERNEL_OK")
</pallas_src>

<mosaic_0001>
module attributes {stable_mosaic.version = 11 : i64} {
  func.func @conv_module_kernel(%arg0: i32, %arg1: i32, %arg2: memref<2xi32, #tpu.memory_space<smem>>, %arg3: memref<1x16x128xbf16, #tpu.memory_space<vmem>>, %arg4: memref<1x32x128xbf16, #tpu.memory_space<vmem>>, %arg5: memref<1x16x128xbf16, #tpu.memory_space<vmem>>, %arg6: memref<128x256xbf16, #tpu.memory_space<vmem>>, %arg7: memref<1x256xf32, #tpu.memory_space<vmem>>, %arg8: memref<7x128xf32, #tpu.memory_space<vmem>>, %arg9: memref<1x128xf32, #tpu.memory_space<vmem>>, %arg10: memref<128x128xbf16, #tpu.memory_space<vmem>>, %arg11: memref<1x128xf32, #tpu.memory_space<vmem>>, %arg12: memref<1x32x128xf32, #tpu.memory_space<vmem>>) attributes {dimension_semantics = [#tpu.dimension_semantics<parallel>, #tpu.dimension_semantics<parallel>], iteration_bounds = array<i64: 2, 2>, scalar_prefetch = 1 : i64, scratch_operands = 0 : i64, tpu.core_type = #tpu.core_type<tc>, window_params = [{transform_indices = @transform_0, window_bounds = array<i64: 1, 16, 128>}, {transform_indices = @transform_1, window_bounds = array<i64: 1, 32, 128>}, {transform_indices = @transform_2, window_bounds = array<i64: 1, 16, 128>}, {pipeline_mode = #tpu.pipeline_mode<synchronous>, transform_indices = @transform_3, window_bounds = array<i64: 128, 256>}, {pipeline_mode = #tpu.pipeline_mode<synchronous>, transform_indices = @transform_4, window_bounds = array<i64: 1, 256>}, {pipeline_mode = #tpu.pipeline_mode<synchronous>, transform_indices = @transform_5, window_bounds = array<i64: 7, 128>}, {pipeline_mode = #tpu.pipeline_mode<synchronous>, transform_indices = @transform_6, window_bounds = array<i64: 1, 128>}, {pipeline_mode = #tpu.pipeline_mode<synchronous>, transform_indices = @transform_7, window_bounds = array<i64: 128, 128>}, {pipeline_mode = #tpu.pipeline_mode<synchronous>, transform_indices = @transform_8, window_bounds = array<i64: 1, 128>}, {transform_indices = @transform_9, window_bounds = array<i64: 1, 32, 128>}]} {
    %c32_i32 = arith.constant 32 : i32
    %0 = arith.muli %arg1, %c32_i32 : i32
    %1 = tpu.assume_multiple %0, 32 : i32
    %2 = arith.index_cast %arg0 : i32 to index
    %3 = memref.load %arg2[%2] : memref<2xi32, #tpu.memory_space<smem>>
    %c0 = arith.constant 0 : index
    %c0_0 = arith.constant 0 : index
    %c0_1 = arith.constant 0 : index
    %4 = vector.load %arg3[%c0, %c0_0, %c0_1] : memref<1x16x128xbf16, #tpu.memory_space<vmem>>, vector<1x16x128xbf16>
    %5 = vector.shape_cast %4 : vector<1x16x128xbf16> to vector<16x128xbf16>
    %c0_2 = arith.constant 0 : index
    %c0_3 = arith.constant 0 : index
    %c0_4 = arith.constant 0 : index
    %6 = vector.load %arg4[%c0_2, %c0_3, %c0_4] : memref<1x32x128xbf16, #tpu.memory_space<vmem>>, vector<1x32x128xbf16>
    %7 = vector.shape_cast %6 : vector<1x32x128xbf16> to vector<32x128xbf16>
    %c0_5 = arith.constant 0 : index
    %c0_6 = arith.constant 0 : index
    %c0_7 = arith.constant 0 : index
    %8 = vector.load %arg5[%c0_5, %c0_6, %c0_7] : memref<1x16x128xbf16, #tpu.memory_space<vmem>>, vector<1x16x128xbf16>
    %9 = vector.shape_cast %8 : vector<1x16x128xbf16> to vector<16x128xbf16>
    %10 = tpu.concatenate %5, %7, %9 in 0 : vector<16x128xbf16>, vector<32x128xbf16>, vector<16x128xbf16> -> vector<64x128xbf16>
    %c16_i32 = arith.constant 16 : i32
    %11 = arith.subi %1, %c16_i32 : i32
    %12 = tpu.iota {dimensions = array<i32: 0>} : vector<64x1xi32>
    %13 = vector.broadcast %11 : i32 to vector<64x1xi32>
    %14 = arith.addi %13, %12 : vector<64x1xi32>
    %15 = vector.broadcast %3 : i32 to vector<64x1xi32>
    %16 = arith.cmpi slt, %14, %15 : vector<64x1xi32>
    %c0_i32 = arith.constant 0 : i32
    %17 = vector.broadcast %c0_i32 : i32 to vector<64x1xi32>
    %18 = arith.cmpi sge, %14, %17 : vector<64x1xi32>
    %c64_i32 = arith.constant 64 : i32
    %19 = vector.broadcast %c64_i32 : i32 to vector<64x1xi32>
    %20 = arith.cmpi slt, %14, %19 : vector<64x1xi32>
    %21 = arith.andi %18, %20 : vector<64x1xi1>
    %22 = arith.extui %16 : vector<64x1xi1> to vector<64x1xi32>
    %23 = arith.sitofp %22 : vector<64x1xi32> to vector<64x1xf32>
    %24 = arith.truncf %23 : vector<64x1xf32> to vector<64x1xbf16>
    %25 = vector.broadcast %24 : vector<64x1xbf16> to vector<64x128xbf16>
    %26 = arith.mulf %10, %25 : vector<64x128xbf16>
    %c0_8 = arith.constant 0 : index
    %c0_9 = arith.constant 0 : index
    %27 = vector.load %arg6[%c0_8, %c0_9] : memref<128x256xbf16, #tpu.memory_space<vmem>>, vector<128x256xbf16>
    %cst = arith.constant dense<0.000000e+00> : vector<64x256xf32>
    %28 = tpu.matmul %26, %27, %cst {dimension_numbers = #tpu.dot_dimension_numbers<[1], [0], [0], [1], [0, 0, 1, 1], [], []>} : vector<64x128xbf16>, vector<128x256xbf16>, vector<64x256xf32> -> vector<64x256xf32>
    %c0_10 = arith.constant 0 : index
    %c0_11 = arith.constant 0 : index
    %29 = vector.load %arg7[%c0_10, %c0_11] : memref<1x256xf32, #tpu.memory_space<vmem>>, vector<1x256xf32>
    %30 = vector.broadcast %29 : vector<1x256xf32> to vector<64x256xf32>
    %31 = arith.addf %28, %30 : vector<64x256xf32>
    %32 = vector.extract_strided_slice %31 {offsets = [0, 0], sizes = [64, 128], strides = [1, 1]} : vector<64x256xf32> to vector<64x128xf32>
    %33 = vector.extract_strided_slice %31 {offsets = [0, 128], sizes = [64, 128], strides = [1, 1]} : vector<64x256xf32> to vector<64x128xf32>
    %34 = arith.negf %33 : vector<64x128xf32>
    %35 = math.exp %34 : vector<64x128xf32>
    %cst_12 = arith.constant 1.000000e+00 : f32
    %36 = vector.broadcast %cst_12 : f32 to vector<64x128xf32>
    %37 = arith.addf %36, %35 : vector<64x128xf32>
    %38 = arith.divf %36, %37 : vector<64x128xf32>
    %39 = arith.mulf %32, %38 : vector<64x128xf32>
    %40 = arith.extui %21 : vector<64x1xi1> to vector<64x1xi32>
    %41 = arith.sitofp %40 : vector<64x1xi32> to vector<64x1xf32>
    %42 = vector.broadcast %41 : vector<64x1xf32> to vector<64x128xf32>
    %43 = arith.mulf %39, %42 : vector<64x128xf32>
    %c0_13 = arith.constant 0 : index
    %c0_14 = arith.constant 0 : index
    %44 = vector.load %arg8[%c0_13, %c0_14] : memref<7x128xf32, #tpu.memory_space<vmem>>, vector<7x128xf32>
    %45 = vector.extract_strided_slice %43 {offsets = [13, 0], sizes = [32, 128], strides = [1, 1]} : vector<64x128xf32> to vector<32x128xf32>
    %46 = vector.extract_strided_slice %44 {offsets = [0, 0], sizes = [1, 128], strides = [1, 1]} : vector<7x128xf32> to vector<1x128xf32>
    %47 = vector.broadcast %46 : vector<1x128xf32> to vector<32x128xf32>
    %48 = arith.mulf %45, %47 : vector<32x128xf32>
    %49 = vector.extract_strided_slice %43 {offsets = [14, 0], sizes = [32, 128], strides = [1, 1]} : vector<64x128xf32> to vector<32x128xf32>
    %50 = vector.extract_strided_slice %44 {offsets = [1, 0], sizes = [1, 128], strides = [1, 1]} : vector<7x128xf32> to vector<1x128xf32>
    %51 = vector.broadcast %50 : vector<1x128xf32> to vector<32x128xf32>
    %52 = arith.mulf %49, %51 : vector<32x128xf32>
    %53 = arith.addf %48, %52 : vector<32x128xf32>
    %54 = vector.extract_strided_slice %43 {offsets = [15, 0], sizes = [32, 128], strides = [1, 1]} : vector<64x128xf32> to vector<32x128xf32>
    %55 = vector.extract_strided_slice %44 {offsets = [2, 0], sizes = [1, 128], strides = [1, 1]} : vector<7x128xf32> to vector<1x128xf32>
    %56 = vector.broadcast %55 : vector<1x128xf32> to vector<32x128xf32>
    %57 = arith.mulf %54, %56 : vector<32x128xf32>
    %58 = arith.addf %53, %57 : vector<32x128xf32>
    %59 = vector.extract_strided_slice %43 {offsets = [16, 0], sizes = [32, 128], strides = [1, 1]} : vector<64x128xf32> to vector<32x128xf32>
    %60 = vector.extract_strided_slice %44 {offsets = [3, 0], sizes = [1, 128], strides = [1, 1]} : vector<7x128xf32> to vector<1x128xf32>
    %61 = vector.broadcast %60 : vector<1x128xf32> to vector<32x128xf32>
    %62 = arith.mulf %59, %61 : vector<32x128xf32>
    %63 = arith.addf %58, %62 : vector<32x128xf32>
    %64 = vector.extract_strided_slice %43 {offsets = [17, 0], sizes = [32, 128], strides = [1, 1]} : vector<64x128xf32> to vector<32x128xf32>
    %65 = vector.extract_strided_slice %44 {offsets = [4, 0], sizes = [1, 128], strides = [1, 1]} : vector<7x128xf32> to vector<1x128xf32>
    %66 = vector.broadcast %65 : vector<1x128xf32> to vector<32x128xf32>
    %67 = arith.mulf %64, %66 : vector<32x128xf32>
    %68 = arith.addf %63, %67 : vector<32x128xf32>
    %69 = vector.extract_strided_slice %43 {offsets = [18, 0], sizes = [32, 128], strides = [1, 1]} : vector<64x128xf32> to vector<32x128xf32>
    %70 = vector.extract_strided_slice %44 {offsets = [5, 0], sizes = [1, 128], strides = [1, 1]} : vector<7x128xf32> to vector<1x128xf32>
    %71 = vector.broadcast %70 : vector<1x128xf32> to vector<32x128xf32>
    %72 = arith.mulf %69, %71 : vector<32x128xf32>
    %73 = arith.addf %68, %72 : vector<32x128xf32>
    %74 = vector.extract_strided_slice %43 {offsets = [19, 0], sizes = [32, 128], strides = [1, 1]} : vector<64x128xf32> to vector<32x128xf32>
    %75 = vector.extract_strided_slice %44 {offsets = [6, 0], sizes = [1, 128], strides = [1, 1]} : vector<7x128xf32> to vector<1x128xf32>
    %76 = vector.broadcast %75 : vector<1x128xf32> to vector<32x128xf32>
    %77 = arith.mulf %74, %76 : vector<32x128xf32>
    %78 = arith.addf %73, %77 : vector<32x128xf32>
    %c0_15 = arith.constant 0 : index
    %c0_16 = arith.constant 0 : index
    %79 = vector.load %arg9[%c0_15, %c0_16] : memref<1x128xf32, #tpu.memory_space<vmem>>, vector<1x128xf32>
    %80 = vector.broadcast %79 : vector<1x128xf32> to vector<32x128xf32>
    %81 = arith.addf %78, %80 : vector<32x128xf32>
    %82 = arith.negf %81 : vector<32x128xf32>
    %83 = math.exp %82 : vector<32x128xf32>
    %cst_17 = arith.constant 1.000000e+00 : f32
    %84 = vector.broadcast %cst_17 : f32 to vector<32x128xf32>
    %85 = arith.addf %84, %83 : vector<32x128xf32>
    %86 = arith.divf %84, %85 : vector<32x128xf32>
    %87 = arith.mulf %81, %86 : vector<32x128xf32>
    %88 = arith.truncf %87 : vector<32x128xf32> to vector<32x128xbf16>
    %c0_18 = arith.constant 0 : index
    %c0_19 = arith.constant 0 : index
    %89 = vector.load %arg10[%c0_18, %c0_19] : memref<128x128xbf16, #tpu.memory_space<vmem>>, vector<128x128xbf16>
    %cst_20 = arith.constant dense<0.000000e+00> : vector<32x128xf32>
    %90 = tpu.matmul %88, %89, %cst_20 {dimension_numbers = #tpu.dot_dimension_numbers<[1], [0], [0], [1], [0, 0, 1, 1], [], []>} : vector<32x128xbf16>, vector<128x128xbf16>, vector<32x128xf32> -> vector<32x128xf32>
    %c0_21 = arith.constant 0 : index
    %c0_22 = arith.constant 0 : index
    %91 = vector.load %arg11[%c0_21, %c0_22] : memref<1x128xf32, #tpu.memory_space<vmem>>, vector<1x128xf32>
    %92 = vector.broadcast %91 : vector<1x128xf32> to vector<32x128xf32>
    %93 = arith.addf %90, %92 : vector<32x128xf32>
    %94 = tpu.iota {dimensions = array<i32: 0>} : vector<32x1xi32>
    %95 = vector.broadcast %1 : i32 to vector<32x1xi32>
    %96 = arith.addi %95, %94 : vector<32x1xi32>
    %97 = vector.broadcast %3 : i32 to vector<32x1xi32>
    %98 = arith.cmpi slt, %96, %97 : vector<32x1xi32>
    %99 = arith.extui %98 : vector<32x1xi1> to vector<32x1xi32>
    %100 = arith.sitofp %99 : vector<32x1xi32> to vector<32x1xf32>
    %101 = vector.broadcast %100 : vector<32x1xf32> to vector<32x128xf32>
    %102 = arith.mulf %93, %101 : vector<32x128xf32>
    %c0_23 = arith.constant 0 : index
    %c0_24 = arith.constant 0 : index
    %c0_25 = arith.constant 0 : index
    %103 = vector.load %arg12[%c0_23, %c0_24, %c0_25] : memref<1x32x128xf32, #tpu.memory_space<vmem>>, vector<1x32x128xf32>
    %104 = vector.shape_cast %103 : vector<1x32x128xf32> to vector<32x128xf32>
    %105 = vector.shape_cast %102 : vector<32x128xf32> to vector<1x32x128xf32>
    tpu.vector_store %arg12[%c0_23, %c0_24, %c0_25], %105 {strides = array<i32>} : memref<1x32x128xf32, #tpu.memory_space<vmem>>, vector<1x32x128xf32>,
    return
  }
  func.func @transform_0(%arg0: i32, %arg1: i32, %arg2: memref<2xi32, #tpu.memory_space<smem>>) -> (i32, i32, i32) {
    %c2_i32 = arith.constant 2 : i32
    %0 = arith.muli %arg1, %c2_i32 : i32
    %c1_i32 = arith.constant 1 : i32
    %1 = arith.subi %0, %c1_i32 : i32
    %c0_i32 = arith.constant 0 : i32
    %2 = arith.maxsi %1, %c0_i32 : i32
    %c0_i32_0 = arith.constant 0 : i32
    %c0_i32_1 = arith.constant 0 : i32
    return %arg0, %2, %c0_i32_0 : i32, i32, i32
  }
  func.func @transform_1(%arg0: i32, %arg1: i32, %arg2: memref<2xi32, #tpu.memory_space<smem>>) -> (i32, i32, i32) {
    %c0_i32 = arith.constant 0 : i32
    %c0_i32_0 = arith.constant 0 : i32
    return %arg0, %arg1, %c0_i32 : i32, i32, i32
  }
  func.func @transform_2(%arg0: i32, %arg1: i32, %arg2: memref<2xi32, #tpu.memory_space<smem>>) -> (i32, i32, i32) {
    %c1_i32 = arith.constant 1 : i32
    %0 = arith.addi %arg1, %c1_i32 : i32
    %c2_i32 = arith.constant 2 : i32
    %1 = arith.muli %0, %c2_i32 : i32
    %c3_i32 = arith.constant 3 : i32
    %2 = arith.minsi %1, %c3_i32 : i32
    %c0_i32 = arith.constant 0 : i32
    %c0_i32_0 = arith.constant 0 : i32
    return %arg0, %2, %c0_i32 : i32, i32, i32
  }
  func.func @transform_3(%arg0: i32, %arg1: i32, %arg2: memref<2xi32, #tpu.memory_space<smem>>) -> (i32, i32) {
    %c0_i32 = arith.constant 0 : i32
    %c0_i32_0 = arith.constant 0 : i32
    %c0_i32_1 = arith.constant 0 : i32
    return %c0_i32, %c0_i32_0 : i32, i32
  }
  func.func @transform_4(%arg0: i32, %arg1: i32, %arg2: memref<2xi32, #tpu.memory_space<smem>>) -> (i32, i32) {
    %c0_i32 = arith.constant 0 : i32
    %c0_i32_0 = arith.constant 0 : i32
    %c0_i32_1 = arith.constant 0 : i32
    return %c0_i32, %c0_i32_0 : i32, i32
  }
  func.func @transform_5(%arg0: i32, %arg1: i32, %arg2: memref<2xi32, #tpu.memory_space<smem>>) -> (i32, i32) {
    %c0_i32 = arith.constant 0 : i32
    %c0_i32_0 = arith.constant 0 : i32
    %c0_i32_1 = arith.constant 0 : i32
    return %c0_i32, %c0_i32_0 : i32, i32
  }
  func.func @transform_6(%arg0: i32, %arg1: i32, %arg2: memref<2xi32, #tpu.memory_space<smem>>) -> (i32, i32) {
    %c0_i32 = arith.constant 0 : i32
    %c0_i32_0 = arith.constant 0 : i32
    %c0_i32_1 = arith.constant 0 : i32
    return %c0_i32, %c0_i32_0 : i32, i32
  }
  func.func @transform_7(%arg0: i32, %arg1: i32, %arg2: memref<2xi32, #tpu.memory_space<smem>>) -> (i32, i32) {
    %c0_i32 = arith.constant 0 : i32
    %c0_i32_0 = arith.constant 0 : i32
    %c0_i32_1 = arith.constant 0 : i32
    return %c0_i32, %c0_i32_0 : i32, i32
  }
  func.func @transform_8(%arg0: i32, %arg1: i32, %arg2: memref<2xi32, #tpu.memory_space<smem>>) -> (i32, i32) {
    %c0_i32 = arith.constant 0 : i32
    %c0_i32_0 = arith.constant 0 : i32
    %c0_i32_1 = arith.constant 0 : i32
    return %c0_i32, %c0_i32_0 : i32, i32
  }
  func.func @transform_9(%arg0: i32, %arg1: i32, %arg2: memref<2xi32, #tpu.memory_space<smem>>) -> (i32, i32, i32) {
    %c0_i32 = arith.constant 0 : i32
    %c0_i32_0 = arith.constant 0 : i32
    return %arg0, %arg1, %c0_i32 : i32, i32, i32
  }
}

</mosaic_0001>

<llo_original>
// kernel: tpu_custom_call.1
$region0: #{tpu_custom_call.1}
  #allocation0 [shape = 'u32[]', space=smem, size = 0x4, offset = 0x4, fixed_abs, tag = 'smem constant byte address 0x4 - core index']
  #allocation1 [shape = 'u32[144,128]{1,0:T(1,128)}', space=vmem, size = 0x12000, scoped, tag = 'internal scratch']
  #allocation2 [shape = 's32[1]{0}', space=sflag, size = 0x4, scoped, tag = 'scoped memory for tpu_custom_call.1']
  #allocation3 [shape = 'u8[512]{0}', space=smem, size = 0x200, scoped, tag = 'prefetched SMEM operand 0']
  %s0 = inlined_call_operand.hbm [shape: s32[2], index: 0, kind: input, shape index: {}]
  %s1 = inlined_call_operand.hbm [shape: bf16[2,64,128], index: 1, kind: input, shape index: {}]
  %s2 = inlined_call_operand.hbm [shape: bf16[2,64,128], index: 2, kind: input, shape index: {}]
  %s3 = inlined_call_operand.hbm [shape: bf16[2,64,128], index: 3, kind: input, shape index: {}]
  %s4 = inlined_call_operand.hbm [shape: bf16[128,256], index: 4, kind: input, shape index: {}]
  %s5 = inlined_call_operand.vmem [shape: f32[1,256], index: 5, kind: input, shape index: {}]
  %s6 = inlined_call_operand.vmem [shape: f32[7,128], index: 6, kind: input, shape index: {}]
  %s7 = inlined_call_operand.vmem [shape: f32[1,128], index: 7, kind: input, shape index: {}]
  %s8 = inlined_call_operand.hbm [shape: bf16[128,128], index: 8, kind: input, shape index: {}]
  %s9 = inlined_call_operand.vmem [shape: f32[1,128], index: 9, kind: input, shape index: {}]
  %s10 = inlined_call_operand.hbm [shape: f32[2,64,128], index: 10, kind: output, shape index: {}]
  %s11 = sld [smem:[#allocation0]]
  $region89: #{tpu_custom_call.1} parent=0
    _
  %s13 = ssub.s32 1, %s11
  %s14 = scalar_select 0, %s13, %s11
  %16 = dma.hbm_to_smem %s0, 16, [#allocation3], [#allocation2]
  %17 = dma.done [#allocation2], 16
  %18 = sfence
  $region1: #{tpu_custom_call.1} parent=0
    #allocation4 [shape = 'u8[8192]{0}', space=vmem, size = 0x2000, scoped, tag = 'input window, operand 1']
    #allocation5 [shape = 's32[2]{0}', space=sflag, size = 0x8, scoped, tag = 'scoped memory for tpu_custom_call.1']
    #allocation6 [shape = 's32[2]{0}', space=sflag, size = 0x8, scoped, tag = 'scoped memory for tpu_custom_call.1']
    #allocation7 [shape = 'u8[16384]{0}', space=vmem, size = 0x4000, scoped, tag = 'input window, operand 2']
    #allocation8 [shape = 's32[2]{0}', space=sflag, size = 0x8, scoped, tag = 'scoped memory for tpu_custom_call.1']
    #allocation9 [shape = 'u8[8192]{0}', space=vmem, size = 0x2000, scoped, tag = 'input window, operand 3']
    #allocation10 [shape = 'u8[65536]{0}', space=vmem, size = 0x10000, scoped, tag = 'input window, operand 4, single buffered']
    #allocation11 [shape = 's32[1]{0}', space=sflag, size = 0x4, scoped, tag = 'scoped memory for tpu_custom_call.1']
    #allocation12 [shape = 'u8[32768]{0}', space=vmem, size = 0x8000, scoped, tag = 'input window, operand 8, single buffered']
    #allocation13 [shape = 'u8[32768]{0}', space=vmem, size = 0x8000, scoped, tag = 'output window, operand 0']
    %19 = vsyncpa [#allocation5], 0
    %s20 = scalar_lea.sflag [#allocation5], 1
    %21 = vsyncpa %s20, 0
    %22 = vsyncpa [#allocation8], 0
    %s23 = scalar_lea.sflag [#allocation8], 1
    %24 = vsyncpa %s23, 0
    %25 = vsyncpa [#allocation11], 0
    %26 = vsyncpa [#allocation6], 0
    %s27 = scalar_lea.sflag [#allocation6], 1
    %28 = vsyncpa %s27, 0
    loop: start=0, step=1, limit=6
    $region2: #{tpu_custom_call.1} parent=1 // loop_pre_header
      _
    $region3: #{tpu_custom_call.1} parent=1 // loop_header
      %s30 = sphi 0, %s34
      %p31 = scmp.ge.s32.totalorder %s30, 6
      %s37 = sphi 0, %s49
      %s38 = sphi 0, %s45
      %s39 = sphi 0, %s37
      %s40 = sphi 0, %s38
      %s41 = sphi 0, %s39
      %s42 = sphi 0, %s40
      %s62 = sphi 0, %s64
      %s65 = sphi 0, %s62
      %s66 = sphi 0, %s65
      %s82 = sphi 0, %s66
      %s90 = sphi 0, %s92
      %s93 = sphi 0, %s90
      %s94 = sphi 0, %s93
      %s110 = sphi 0, %s94
      %s126 = sphi 0, %s128
      %s129 = sphi 0, %s126
      %s130 = sphi 0, %s129
      %s146 = sphi 0, %s130
      %s150 = sphi 0, %s150
      %s152 = sphi 0, %s150
      %s153 = sphi 0, %s152
      %s167 = sphi 0, %s153
      %s171 = sphi 0, %s171
      %s173 = sphi 0, %s171
      %s174 = sphi 0, %s173
      %s188 = sphi 0, %s174
      %s192 = sphi 0, %s192
      %s194 = sphi 0, %s192
      %s195 = sphi 0, %s194
      %s209 = sphi 0, %s195
      %s213 = sphi 0, %s213
      %s215 = sphi 0, %s213
      %s216 = sphi 0, %s215
      %s230 = sphi 0, %s216
      %s234 = sphi 0, %s234
      %s236 = sphi 0, %s234
      %s237 = sphi 0, %s236
      %s251 = sphi 0, %s237
      %s255 = sphi 0, %s255
      %s257 = sphi 0, %s255
      %s258 = sphi 0, %s257
      %s272 = sphi 0, %s258
      %s280 = sphi 0, %s282
      %s283 = sphi 0, %s280
      %s284 = sphi 0, %s283
      %s300 = sphi 0, %s284
    $region4: #{tpu_custom_call.1} parent=1 // loop_header_branch
      %33 = sbr.rel (%p31) target = $region8
    $region5: #{tpu_custom_call.1} parent=1 // loop_body
      %s35 = ssub.s32 %s30, 1
      %s36 = ssub.s32 %s30, 2
      %s43 = sadd.s32 1, %s38
      %p44 = scmp.ge.s32.totalorder %s43, 2
      %s45 = scalar_select %p44, 0, %s43
      %s46 = sadd.s32 1, %s37
      %s47 = scalar_select %p44, %s46, %s37
      %p48 = scmp.ge.s32.totalorder %s47, 2
      %s49 = scalar_select %p48, 0, %s47
      %s50 = smul.u32 %s38, 2
      %s51 = ssub.s32 %s50, 1
      %p52 = scmp.gt.s32.totalorder %s51, 0
      %s53 = scalar_select %p52, %s51, 0
      %s54 = smul.u32 %s45, 2
      %s55 = ssub.s32 %s54, 1
      %p56 = scmp.gt.s32.totalorder %s55, 0
      %s57 = scalar_select %p56, %s55, 0
      %s58 = ssub.s32 %s37, %s49
      %s59 = ssub.s32 %s53, %s57
      %s60 = sor.u32 %s58, %s59
      %p61 = scmp.eq.s32.totalorder %s60, 0
      %s63 = sadd.s32 %s62, 1
      %s64 = scalar_select %p61, %s62, %s63
      %p67 = pneg %p61
      %p68 = scmp.eq.s32.totalorder %s30, 3
      %p69 = por %p67, %p68
      %p70 = scmp.ne.s32.totalorder %s62, %s65
      %p71 = scmp.eq.s32.totalorder %s30, 0
      %p72 = por %p70, %p71
      %p73 = scmp.ne.s32.totalorder %s62, %s65
      %p74 = scmp.eq.s32.totalorder %s35, 3
      %p75 = por %p73, %p74
      %p76 = scmp.ne.s32.totalorder %s65, %s66
      %p77 = scmp.eq.s32.totalorder %s35, 0
      %p78 = por %p76, %p77
      %p79 = scmp.ne.s32.totalorder %s65, %s66
      %p80 = scmp.eq.s32.totalorder %s36, 3
      %p81 = por %p79, %p80
      %p83 = scmp.ne.s32.totalorder %s66, %s82
      %p84 = scmp.eq.s32.totalorder %s36, 0
      %p85 = por %p83, %p84
      %s86 = ssub.s32 %s37, %s49
      %s87 = ssub.s32 %s38, %s45
      %s88 = sor.u32 %s86, %s87
      %p89 = scmp.eq.s32.totalorder %s88, 0
      %s91 = sadd.s32 %s90, 1
      %s92 = scalar_select %p89, %s90, %s91
      %p95 = pneg %p89
      %p96 = scmp.eq.s32.totalorder %s30, 3
      %p97 = por %p95, %p96
      %p98 = scmp.ne.s32.totalorder %s90, %s93
      %p99 = scmp.eq.s32.totalorder %s30, 0
      %p100 = por %p98, %p99
      %p101 = scmp.ne.s32.totalorder %s90, %s93
      %p102 = scmp.eq.s32.totalorder %s35, 3
      %p103 = por %p101, %p102
      %p104 = scmp.ne.s32.totalorder %s93, %s94
      %p105 = scmp.eq.s32.totalorder %s35, 0
      %p106 = por %p104, %p105
      %p107 = scmp.ne.s32.totalorder %s93, %s94
      %p108 = scmp.eq.s32.totalorder %s36, 3
      %p109 = por %p107, %p108
      %p111 = scmp.ne.s32.totalorder %s94, %s110
      %p112 = scmp.eq.s32.totalorder %s36, 0
      %p113 = por %p111, %p112
      %s114 = sadd.s32 %s38, 1
      %s115 = smul.u32 %s114, 2
      %p116 = scmp.lt.s32.totalorder %s115, 3
      %s117 = scalar_select %p116, %s115, 3
      %s118 = sadd.s32 %s45, 1
      %s119 = smul.u32 %s118, 2
      %p120 = scmp.lt.s32.totalorder %s119, 3
      %s121 = scalar_select %p120, %s119, 3
      %s122 = ssub.s32 %s37, %s49
      %s123 = ssub.s32 %s117, %s121
      %s124 = sor.u32 %s122, %s123
      %p125 = scmp.eq.s32.totalorder %s124, 0
      %s127 = sadd.s32 %s126, 1
      %s128 = scalar_select %p125, %s126, %s127
      %p131 = pneg %p125
      %p132 = scmp.eq.s32.totalorder %s30, 3
      %p133 = por %p131, %p132
      %p134 = scmp.ne.s32.totalorder %s126, %s129
      %p135 = scmp.eq.s32.totalorder %s30, 0
      %p136 = por %p134, %p135
      %p137 = scmp.ne.s32.totalorder %s126, %s129
      %p138 = scmp.eq.s32.totalorder %s35, 3
      %p139 = por %p137, %p138
      %p140 = scmp.ne.s32.totalorder %s129, %s130
      %p141 = scmp.eq.s32.totalorder %s35, 0
      %p142 = por %p140, %p141
      %p143 = scmp.ne.s32.totalorder %s129, %s130
      %p144 = scmp.eq.s32.totalorder %s36, 3
      %p145 = por %p143, %p144
      %p147 = scmp.ne.s32.totalorder %s130, %s146
      %p148 = scmp.eq.s32.totalorder %s36, 0
      %p149 = por %p147, %p148
      %s151 = sadd.s32 %s150, 1
      %p154 = scmp.eq.s32.totalorder %s30, 3
      %p155 = scmp.ne.s32.totalorder %s150, %s152
      %p156 = scmp.eq.s32.totalorder %s30, 0
      %p157 = por %p155, %p156
      %p158 = scmp.ne.s32.totalorder %s150, %s152
      %p159 = scmp.eq.s32.totalorder %s35, 3
      %p160 = por %p158, %p159
      %p161 = scmp.ne.s32.totalorder %s152, %s153
      %p162 = scmp.eq.s32.totalorder %s35, 0
      %p163 = por %p161, %p162
      %p164 = scmp.ne.s32.totalorder %s152, %s153
      %p165 = scmp.eq.s32.totalorder %s36, 3
      %p166 = por %p164, %p165
      %p168 = scmp.ne.s32.totalorder %s153, %s167
      %p169 = scmp.eq.s32.totalorder %s36, 0
      %p170 = por %p168, %p169
      %s172 = sadd.s32 %s171, 1
      %p175 = scmp.eq.s32.totalorder %s30, 3
      %p176 = scmp.ne.s32.totalorder %s171, %s173
      %p177 = scmp.eq.s32.totalorder %s30, 0
      %p178 = por %p176, %p177
      %p179 = scmp.ne.s32.totalorder %s171, %s173
      %p180 = scmp.eq.s32.totalorder %s35, 3
      %p181 = por %p179, %p180
      %p182 = scmp.ne.s32.totalorder %s173, %s174
      %p183 = scmp.eq.s32.totalorder %s35, 0
      %p184 = por %p182, %p183
      %p185 = scmp.ne.s32.totalorder %s173, %s174
      %p186 = scmp.eq.s32.totalorder %s36, 3
      %p187 = por %p185, %p186
      %p189 = scmp.ne.s32.totalorder %s174, %s188
      %p190 = scmp.eq.s32.totalorder %s36, 0
      %p191 = por %p189, %p190
      %s193 = sadd.s32 %s192, 1
      %p196 = scmp.eq.s32.totalorder %s30, 3
      %p197 = scmp.ne.s32.totalorder %s192, %s194
      %p198 = scmp.eq.s32.totalorder %s30, 0
      %p199 = por %p197, %p198
      %p200 = scmp.ne.s32.totalorder %s192, %s194
      %p201 = scmp.eq.s32.totalorder %s35, 3
      %p202 = por %p200, %p201
      %p203 = scmp.ne.s32.totalorder %s194, %s195
      %p204 = scmp.eq.s32.totalorder %s35, 0
      %p205 = por %p203, %p204
      %p206 = scmp.ne.s32.totalorder %s194, %s195
      %p207 = scmp.eq.s32.totalorder %s36, 3
      %p208 = por %p206, %p207
      %p210 = scmp.ne.s32.totalorder %s195, %s209
      %p211 = scmp.eq.s32.totalorder %s36, 0
      %p212 = por %p210, %p211
      %s214 = sadd.s32 %s213, 1
      %p217 = scmp.eq.s32.totalorder %s30, 3
      %p218 = scmp.ne.s32.totalorder %s213, %s215
      %p219 = scmp.eq.s32.totalorder %s30, 0
      %p220 = por %p218, %p219
      %p221 = scmp.ne.s32.totalorder %s213, %s215
      %p222 = scmp.eq.s32.totalorder %s35, 3
      %p223 = por %p221, %p222
      %p224 = scmp.ne.s32.totalorder %s215, %s216
      %p225 = scmp.eq.s32.totalorder %s35, 0
      %p226 = por %p224, %p225
      %p227 = scmp.ne.s32.totalorder %s215, %s216
      %p228 = scmp.eq.s32.totalorder %s36, 3
      %p229 = por %p227, %p228
      %p231 = scmp.ne.s32.totalorder %s216, %s230
      %p232 = scmp.eq.s32.totalorder %s36, 0
      %p233 = por %p231, %p232
      %s235 = sadd.s32 %s234, 1
      %p238 = scmp.eq.s32.totalorder %s30, 3
      %p239 = scmp.ne.s32.totalorder %s234, %s236
      %p240 = scmp.eq.s32.totalorder %s30, 0
      %p241 = por %p239, %p240
      %p242 = scmp.ne.s32.totalorder %s234, %s236
      %p243 = scmp.eq.s32.totalorder %s35, 3
      %p244 = por %p242, %p243
      %p245 = scmp.ne.s32.totalorder %s236, %s237
      %p246 = scmp.eq.s32.totalorder %s35, 0
      %p247 = por %p245, %p246
      %p248 = scmp.ne.s32.totalorder %s236, %s237
      %p249 = scmp.eq.s32.totalorder %s36, 3
      %p250 = por %p248, %p249
      %p252 = scmp.ne.s32.totalorder %s237, %s251
      %p253 = scmp.eq.s32.totalorder %s36, 0
      %p254 = por %p252, %p253
      %s256 = sadd.s32 %s255, 1
      %p259 = scmp.eq.s32.totalorder %s30, 3
      %p260 = scmp.ne.s32.totalorder %s255, %s257
      %p261 = scmp.eq.s32.totalorder %s30, 0
      %p262 = por %p260, %p261
      %p263 = scmp.ne.s32.totalorder %s255, %s257
      %p264 = scmp.eq.s32.totalorder %s35, 3
      %p265 = por %p263, %p264
      %p266 = scmp.ne.s32.totalorder %s257, %s258
      %p267 = scmp.eq.s32.totalorder %s35, 0
      %p268 = por %p266, %p267
      %p269 = scmp.ne.s32.totalorder %s257, %s258
      %p270 = scmp.eq.s32.totalorder %s36, 3
      %p271 = por %p269, %p270
      %p273 = scmp.ne.s32.totalorder %s258, %s272
      %p274 = scmp.eq.s32.totalorder %s36, 0
      %p275 = por %p273, %p274
      %s276 = ssub.s32 %s37, %s49
      %s277 = ssub.s32 %s38, %s45
      %s278 = sor.u32 %s276, %s277
      %p279 = scmp.eq.s32.totalorder %s278, 0
      %s281 = sadd.s32 %s280, 1
      %s282 = scalar_select %p279, %s280, %s281
      %p285 = pneg %p279
      %p286 = scmp.eq.s32.totalorder %s30, 3
      %p287 = por %p285, %p286
      %p288 = scmp.ne.s32.totalorder %s280, %s283
      %p289 = scmp.eq.s32.totalorder %s30, 0
      %p290 = por %p288, %p289
      %p291 = scmp.ne.s32.totalorder %s280, %s283
      %p292 = scmp.eq.s32.totalorder %s35, 3
      %p293 = por %p291, %p292
      %p294 = scmp.ne.s32.totalorder %s283, %s284
      %p295 = scmp.eq.s32.totalorder %s35, 0
      %p296 = por %p294, %p295
      %p297 = scmp.ne.s32.totalorder %s283, %s284
      %p298 = scmp.eq.s32.totalorder %s36, 3
      %p299 = por %p297, %p298
      %p301 = scmp.ne.s32.totalorder %s284, %s300
      %p302 = scmp.eq.s32.totalorder %s36, 0
      %p303 = por %p301, %p302
      %p304 = scmp.le.s32.totalorder 1, %s30
      %p305 = scmp.lt.s32.totalorder %s30, 5
      %p306 = pnand %p304, %p305
      %p307 = pneg %p306
      // Predicated region
      $region9: #{tpu_custom_call.1} parent=5 // pred_check
        _
      $region10: #{tpu_custom_call.1} parent=5 // pred_check_branch
        %309 = sbr.rel (%p306) target = $region12
      $region11: #{tpu_custom_call.1} parent=5 // pred_region
        %s310 = ssub.s32 %s30, 1
        // Predicated region
        $region13: #{tpu_custom_call.1} parent=11 // pred_check
          %p311 = pneg %p163
        $region14: #{tpu_custom_call.1} parent=11 // pred_check_branch
          %313 = sbr.rel (%p311) target = $region16
        $region15: #{tpu_custom_call.1} parent=11 // pred_region
          %s315 = ssub.s32 2048, 2048
          %316 = vsyncadd [#allocation11], %s315
          %s317 = sshll.u32 [#allocation10], 4
          %s318 = int_to_ptr.vmem [resolvable:$true] %s317
          %323 = dma.hbm_to_vmem [thread:$0]  %s4, 2048, %s318, [#allocation11], 128, 128, 8
        $region16: #{tpu_custom_call.1} parent=11 // pred_fallthru
          _
        // Predicated region
        $region17: #{tpu_custom_call.1} parent=11 // pred_check
          %p324 = pneg %p184
        $region18: #{tpu_custom_call.1} parent=11 // pred_check_branch
          %326 = sbr.rel (%p324) target = $region20
        $region19: #{tpu_custom_call.1} parent=11 // pred_region
          _
        $region20: #{tpu_custom_call.1} parent=11 // pred_fallthru
          _
        // Predicated region
        $region21: #{tpu_custom_call.1} parent=11 // pred_check
          %p327 = pneg %p205
        $region22: #{tpu_custom_call.1} parent=11 // pred_check_branch
          %329 = sbr.rel (%p327) target = $region24
        $region23: #{tpu_custom_call.1} parent=11 // pred_region
          _
        $region24: #{tpu_custom_call.1} parent=11 // pred_fallthru
          _
        // Predicated region
        $region25: #{tpu_custom_call.1} parent=11 // pred_check
          %p330 = pneg %p226
        $region26: #{tpu_custom_call.1} parent=11 // pred_check_branch
          %332 = sbr.rel (%p330) target = $region28
        $region27: #{tpu_custom_call.1} parent=11 // pred_region
          _
        $region28: #{tpu_custom_call.1} parent=11 // pred_fallthru
          _
        // Predicated region
        $region29: #{tpu_custom_call.1} parent=11 // pred_check
          %p333 = pneg %p247
        $region30: #{tpu_custom_call.1} parent=11 // pred_check_branch
          %335 = sbr.rel (%p333) target = $region32
        $region31: #{tpu_custom_call.1} parent=11 // pred_region
          %s337 = ssub.s32 1024, 1024
          %338 = vsyncadd [#allocation11], %s337
          %s339 = sshll.u32 [#allocation12], 4
          %s340 = int_to_ptr.vmem [resolvable:$true] %s339
          %345 = dma.hbm_to_vmem [thread:$0]  %s8, 1024, %s340, [#allocation11], 64, 64, 4
        $region32: #{tpu_custom_call.1} parent=11 // pred_fallthru
          _
        // Predicated region
        $region33: #{tpu_custom_call.1} parent=11 // pred_check
          %p346 = pneg %p268
        $region34: #{tpu_custom_call.1} parent=11 // pred_check_branch
          %348 = sbr.rel (%p346) target = $region36
        $region35: #{tpu_custom_call.1} parent=11 // pred_region
          _
        $region36: #{tpu_custom_call.1} parent=11 // pred_fallthru
          _
      $region12: #{tpu_custom_call.1} parent=5 // pred_fallthru
        _
      %p349 = scmp.lt.s32.totalorder %s30, 4
      // Predicated region
      $region37: #{tpu_custom_call.1} parent=5 // pred_check
        %p350 = pneg %p349
      $region38: #{tpu_custom_call.1} parent=5 // pred_check_branch
        %352 = sbr.rel (%p350) target = $region40
      $region39: #{tpu_custom_call.1} parent=5 // pred_region
        // Predicated region
        $region41: #{tpu_custom_call.1} parent=39 // pred_check
          %p353 = pneg %p72
        $region42: #{tpu_custom_call.1} parent=39 // pred_check_branch
          %355 = sbr.rel (%p353) target = $region44
        $region43: #{tpu_custom_call.1} parent=39 // pred_region
          %s356 = sand.u32 %s62, 1
          %s357 = scalar_lea.sflag [#allocation5], %s356
          %s358 = sand.u32 %s62, 1
          %s359 = smul.addr %s358, 8
          %s360 = scalar_lea.vmem [#allocation4], %s359
          %s361 = smul.u32 %s38, 2
          %s362 = ssub.s32 %s361, 1
          %p363 = scmp.gt.s32.totalorder %s362, 0
          %s364 = scalar_select %p363, %s362, 0
          %s365 = smul.u32 2, %s364
          %s367 = ssub.s32 128, 128
          %368 = vsyncadd %s357, %s367
          %s369 = smul.addr %s37, 8
          %s370 = sadd.s32 %s365, %s369
          %s371 = smul.addr %s370, 64
          %s372 = scalar_lea.hbm %s1, %s371
          %s373 = sshll.u32 %s360, 4
          %s374 = int_to_ptr.vmem [resolvable:$true] %s373
          %379 = dma.hbm_to_vmem [thread:$0]  %s372, 128, %s374, %s357, 64, 64, 4
        $region44: #{tpu_custom_call.1} parent=39 // pred_fallthru
          _
        // Predicated region
        $region45: #{tpu_custom_call.1} parent=39 // pred_check
          %p380 = pneg %p100
        $region46: #{tpu_custom_call.1} parent=39 // pred_check_branch
          %382 = sbr.rel (%p380) target = $region48
        $region47: #{tpu_custom_call.1} parent=39 // pred_region
          %s383 = sand.u32 %s30, 1
          %s384 = scalar_lea.sflag [#allocation8], %s383
          %s385 = sand.u32 %s90, 1
          %s386 = smul.addr %s385, 16
          %s387 = scalar_lea.vmem [#allocation7], %s386
          %s388 = smul.u32 4, %s38
          %s390 = ssub.s32 256, 256
          %391 = vsyncadd %s384, %s390
          %s392 = smul.addr %s37, 8
          %s393 = sadd.s32 %s388, %s392
          %s394 = smul.addr %s393, 64
          %s395 = scalar_lea.hbm %s2, %s394
          %s396 = sshll.u32 %s387, 4
          %s397 = int_to_ptr.vmem [resolvable:$true] %s396
          %402 = dma.hbm_to_vmem [thread:$0]  %s395, 256, %s397, %s384, 64, 64, 4
        $region48: #{tpu_custom_call.1} parent=39 // pred_fallthru
          _
        // Predicated region
        $region49: #{tpu_custom_call.1} parent=39 // pred_check
          %p403 = pneg %p136
        $region50: #{tpu_custom_call.1} parent=39 // pred_check_branch
          %405 = sbr.rel (%p403) target = $region52
        $region51: #{tpu_custom_call.1} parent=39 // pred_region
          %s406 = sand.u32 %s30, 1
          %s407 = scalar_lea.sflag [#allocation8], %s406
          %s408 = sand.u32 %s126, 1
          %s409 = smul.addr %s408, 8
          %s410 = scalar_lea.vmem [#allocation9], %s409
          %s411 = sadd.s32 %s38, 1
          %s412 = smul.u32 %s411, 2
          %p413 = scmp.lt.s32.totalorder %s412, 3
          %s414 = scalar_select %p413, %s412, 3
          %s415 = smul.u32 2, %s414
          %s417 = ssub.s32 128, 128
          %418 = vsyncadd %s407, %s417
          %s419 = smul.addr %s37, 8
          %s420 = sadd.s32 %s415, %s419
          %s421 = smul.addr %s420, 64
          %s422 = scalar_lea.hbm %s3, %s421
          %s423 = sshll.u32 %s410, 4
          %s424 = int_to_ptr.vmem [resolvable:$true] %s423
          %429 = dma.hbm_to_vmem [thread:$0]  %s422, 128, %s424, %s407, 64, 64, 4
        $region52: #{tpu_custom_call.1} parent=39 // pred_fallthru
          _
      $region40: #{tpu_custom_call.1} parent=5 // pred_fallthru
        _
      %p430 = scmp.le.s32.totalorder 1, %s30
      %p431 = scmp.lt.s32.totalorder %s30, 5
      %p432 = pnand %p430, %p431
      %p433 = pneg %p432
      // Predicated region
      $region53: #{tpu_custom_call.1} parent=5 // pred_check
        _
      $region54: #{tpu_custom_call.1} parent=5 // pred_check_branch
        %435 = sbr.rel (%p432) target = $region56
      $region55: #{tpu_custom_call.1} parent=5 // pred_region
        %s436 = ssub.s32 %s30, 1
        %s437 = sand.u32 %s65, 1
        %s438 = scalar_lea.sflag [#allocation5], %s437
        %s439 = sand.u32 %s65, 1
        %s440 = smul.addr %s439, 8
        %s441 = scalar_lea.vmem [#allocation4], %s440
        // Predicated region
        $region57: #{tpu_custom_call.1} parent=55 // pred_check
          %p442 = pneg %p78
        $region58: #{tpu_custom_call.1} parent=55 // pred_check_branch
          %444 = sbr.rel (%p442) target = $region60
        $region59: #{tpu_custom_call.1} parent=55 // pred_region
          %445 = dma.done %s438, 128
        $region60: #{tpu_custom_call.1} parent=55 // pred_fallthru
          _
        %s446 = sand.u32 %s35, 1
        %s447 = scalar_lea.sflag [#allocation8], %s446
        %s448 = sand.u32 %s93, 1
        %s449 = smul.addr %s448, 16
        %s450 = scalar_lea.vmem [#allocation7], %s449
        // Predicated region
        $region61: #{tpu_custom_call.1} parent=55 // pred_check
          %p451 = pneg %p106
        $region62: #{tpu_custom_call.1} parent=55 // pred_check_branch
          %453 = sbr.rel (%p451) target = $region64
        $region63: #{tpu_custom_call.1} parent=55 // pred_region
          %454 = dma.done %s447, 256
        $region64: #{tpu_custom_call.1} parent=55 // pred_fallthru
          _
        %s455 = sand.u32 %s35, 1
        %s456 = scalar_lea.sflag [#allocation8], %s455
        %s457 = sand.u32 %s129, 1
        %s458 = smul.addr %s457, 8
        %s459 = scalar_lea.vmem [#allocation9], %s458
        // Predicated region
        $region65: #{tpu_custom_call.1} parent=55 // pred_check
          %p460 = pneg %p142
        $region66: #{tpu_custom_call.1} parent=55 // pred_check_branch
          %462 = sbr.rel (%p460) target = $region68
        $region67: #{tpu_custom_call.1} parent=55 // pred_region
          %463 = dma.done %s456, 128
        $region68: #{tpu_custom_call.1} parent=55 // pred_fallthru
          _
        // Predicated region
        $region69: #{tpu_custom_call.1} parent=55 // pred_check
          %p464 = pneg %p163
        $region70: #{tpu_custom_call.1} parent=55 // pred_check_branch
          %466 = sbr.rel (%p464) target = $region72
        $region71: #{tpu_custom_call.1} parent=55 // pred_region
          %467 = dma.done [#allocation11], 2048
        $region72: #{tpu_custom_call.1} parent=55 // pred_fallthru
          _
        // Predicated region
        $region73: #{tpu_custom_call.1} parent=55 // pred_check
          %p468 = pneg %p247
        $region74: #{tpu_custom_call.1} parent=55 // pred_check_branch
          %470 = sbr.rel (%p468) target = $region76
        $region75: #{tpu_custom_call.1} parent=55 // pred_region
          %471 = dma.done [#allocation11], 1024
        $region76: #{tpu_custom_call.1} parent=55 // pred_fallthru
          _
        %s472 = sand.u32 %s65, 1
        %s473 = scalar_lea.sflag [#allocation5], %s472
        %s474 = sand.u32 %s65, 1
        %s475 = smul.addr %s474, 8
        %s476 = scalar_lea.vmem [#allocation4], %s475
        %p477 = pneg %p78
        %p478 = pneg %p75
        %s479 = sand.u32 %s35, 1
        %s480 = scalar_lea.sflag [#allocation8], %s479
        %s481 = sand.u32 %s93, 1
        %s482 = smul.addr %s481, 16
        %s483 = scalar_lea.vmem [#allocation7], %s482
        %p484 = pneg %p106
        %p485 = pneg %p103
        %s486 = sand.u32 %s35, 1
        %s487 = scalar_lea.sflag [#allocation8], %s486
        %s488 = sand.u32 %s129, 1
        %s489 = smul.addr %s488, 8
        %s490 = scalar_lea.vmem [#allocation9], %s489
        %p491 = pneg %p142
        %p492 = pneg %p139
        %p493 = pneg %p163
        %p494 = pneg %p160
        %p495 = pneg %p184
        %p496 = pneg %p181
        %p497 = pneg %p205
        %p498 = pneg %p202
        %p499 = pneg %p226
        %p500 = pneg %p223
        %p501 = pneg %p247
        %p502 = pneg %p244
        %p503 = pneg %p268
        %p504 = pneg %p265
        %p505 = pneg %p296
        %p506 = pneg %p293
        %s507 = sand.u32 %s283, 1
        %s508 = scalar_lea.sflag [#allocation6], %s507
        %s509 = sand.u32 %s283, 1
        %s510 = smul.addr %s509, 32
        %s511 = scalar_lea.vmem [#allocation13], %s510
        %s512 = smul.u32 %s40, 2
        %s513 = ssub.s32 %s512, 1
        %p514 = scmp.gt.s32.totalorder %s513, 0
        %s515 = scalar_select %p514, %s513, 0
        %s516 = smul.u32 2, %s515
        %s517 = smul.u32 4, %s40
        %s518 = sadd.s32 %s40, 1
        %s519 = smul.u32 %s518, 2
        %p520 = scmp.lt.s32.totalorder %s519, 3
        %s521 = scalar_select %p520, %s519, 3
        %s522 = smul.u32 2, %s521
        %s523 = smul.u32 4, %s40
        %s525 = smul.u32 %s40, 32
        %s526 = sld [smem:[#allocation3 + %s39]]
        %v527 = vld [vmem:[%s441] sm:$0xf]
        %v528 = vld [vmem:[%s441 + $0x4] sm:$0xf]
        %v529 = vld [vmem:[%s450] sm:$0xf]
        %v530 = vld [vmem:[%s450 + $0x4] sm:$0xf]
        %v531 = vld [vmem:[%s450 + $0x8] sm:$0xf]
        %v532 = vld [vmem:[%s450 + $0xc] sm:$0xf]
        %v533 = vld [vmem:[%s459] sm:$0xf]
        %v534 = vld [vmem:[%s459 + $0x4] sm:$0xf]
        %v537 = vunpack.c.l.b16 %v527
        %v538 = vunpack.c.l.b16 %v528
        %v539 = vpack.c.b16 %v538, %v537
        %v545 = vunpack.c.l.b16 %v529
        %v546 = vunpack.c.l.b16 %v530
        %v547 = vunpack.c.l.b16 %v531
        %v548 = vunpack.c.l.b16 %v532
        %v549 = vpack.c.b16 %v546, %v545
        %v550 = vpack.c.b16 %v548, %v547
        %v555 = vunpack.c.l.b16 %v533
        %v556 = vunpack.c.l.b16 %v534
        %v557 = vpack.c.b16 %v556, %v555
        %s559 = ssub.s32 %s525, 16
        %v560 = vlaneseq
        %v561 = vshrl.u32 %v560, 7
        %v562 = vadd.s32 %v561, 8
        %v563 = vadd.s32 %v561, 16
        %v564 = vadd.s32 %v561, 24
        %v565 = vadd.s32 %v561, 32
        %v566 = vadd.s32 %v561, 40
        %v567 = vadd.s32 %v561, 48
        %v568 = vadd.s32 %v561, 56
        %v569 = vstv %s559
        %v570 = vadd.s32 %v569, %v561
        %v571 = vadd.s32 %v569, %v562
        %v572 = vadd.s32 %v569, %v563
        %v573 = vadd.s32 %v569, %v564
        %v574 = vadd.s32 %v569, %v565
        %v575 = vadd.s32 %v569, %v566
        %v576 = vadd.s32 %v569, %v567
        %v577 = vadd.s32 %v569, %v568
        %v578 = vstv %s526
        %vm579 = vcmp.lt.s32.totalorder %v570, %v578
        %vm580 = vcmp.lt.s32.totalorder %v571, %v578
        %vm581 = vcmp.lt.s32.totalorder %v572, %v578
        %vm582 = vcmp.lt.s32.totalorder %v573, %v578
        %vm583 = vcmp.lt.s32.totalorder %v574, %v578
        %vm584 = vcmp.lt.s32.totalorder %v575, %v578
        %vm585 = vcmp.lt.s32.totalorder %v576, %v578
        %vm586 = vcmp.lt.s32.totalorder %v577, %v578
        %vm587 = vcmp.ge.s32.totalorder %v571, 0
        %vm588 = vcmp.ge.s32.totalorder %v572, 0
        %vm589 = vcmp.ge.s32.totalorder %v573, 0
        %vm590 = vcmp.ge.s32.totalorder %v574, 0
        %vm591 = vcmp.ge.s32.totalorder %v575, 0
        %vm592 = vcmp.ge.s32.totalorder %v576, 0
        %vm593 = vcmp.lt.s32.totalorder %v571, 64
        %vm594 = vcmp.lt.s32.totalorder %v572, 64
        %vm595 = vcmp.lt.s32.totalorder %v573, 64
        %vm596 = vcmp.lt.s32.totalorder %v574, 64
        %vm597 = vcmp.lt.s32.totalorder %v575, 64
        %vm598 = vcmp.lt.s32.totalorder %v576, 64
        %vm599 = vmand %vm587, %vm593
        %vm600 = vmand %vm588, %vm594
        %vm601 = vmand %vm589, %vm595
        %vm602 = vmand %vm590, %vm596
        %vm603 = vmand %vm591, %vm597
        %vm604 = vmand %vm592, %vm598
        %v605 = vsel %vm579, 1, 0
        %v606 = vsel %vm580, 1, 0
        %v607 = vsel %vm581, 1, 0
        %v608 = vsel %vm582, 1, 0
        %v609 = vsel %vm583, 1, 0
        %v610 = vsel %vm584, 1, 0
        %v611 = vsel %vm585, 1, 0
        %v612 = vsel %vm586, 1, 0
        %v613 = vcvt.s32.f32 %v605
        %v614 = vcvt.s32.f32 %v606
        %v615 = vcvt.s32.f32 %v607
        %v616 = vcvt.s32.f32 %v608
        %v617 = vcvt.s32.f32 %v609
        %v618 = vcvt.s32.f32 %v610
        %v619 = vcvt.s32.f32 %v611
        %v620 = vcvt.s32.f32 %v612
        %v621 = vpack.c.bf16 %v614, %v613
        %v622 = vpack.c.bf16 %v616, %v615
        %v623 = vpack.c.bf16 %v618, %v617
        %v624 = vpack.c.bf16 %v620, %v619
        %v625 = vmul.bf16 %v539, %v621
        %v626 = vmul.bf16 %v549, %v622
        %v627 = vmul.bf16 %v550, %v623
        %v628 = vmul.bf16 %v557, %v624
        %v629 = vld [vmem:[#allocation10] sm:$0xff]
        %v630 = vld [vmem:[#allocation10 + $0x8] sm:$0xff]
        %v631 = vld [vmem:[#allocation10 + $0x10] sm:$0xff]
        %v632 = vld [vmem:[#allocation10 + $0x18] sm:$0xff]
        %v633 = vld [vmem:[#allocation10 + $0x20] sm:$0xff]
        %v634 = vld [vmem:[#allocation10 + $0x28] sm:$0xff]
        %v635 = vld [vmem:[#allocation10 + $0x30] sm:$0xff]
        %v636 = vld [vmem:[#allocation10 + $0x38] sm:$0xff]
        %v637 = vld [vmem:[#allocation10 + $0x40] sm:$0xff]
        %v638 = vld [vmem:[#allocation10 + $0x48] sm:$0xff]
        %v639 = vld [vmem:[#allocation10 + $0x50] sm:$0xff]
        %v640 = vld [vmem:[#allocation10 + $0x58] sm:$0xff]
        %v641 = vld [vmem:[#allocation10 + $0x60] sm:$0xff]
        %v642 = vld [vmem:[#allocation10 + $0x68] sm:$0xff]
        %v643 = vld [vmem:[#allocation10 + $0x70] sm:$0xff]
        %v644 = vld [vmem:[#allocation10 + $0x78] sm:$0xff]
        %v645 = vld [vmem:[%s5] sm:$0x3]
        %v647 = vlaneseq
        %v648 = vshrl.u32 %v647, 7
        %v649 = vsub.s32 0, %v648
        %v650 = vrot.slane %v645, %v649
        %v651 = vlaneseq
        %v652 = vshrl.u32 %v651, 7
        %v653 = vsub.s32 1, %v652
        %v654 = vrot.slane %v645, %v653
        %v673 = vunpack.c.l.b16 %v629
        %v674 = vunpack.c.h.b16 %v629
        %v675 = vunpack.c.l.b16 %v630
        %v676 = vunpack.c.h.b16 %v630
        %v677 = vunpack.c.l.b16 %v631
        %v678 = vunpack.c.h.b16 %v631
        %v679 = vunpack.c.l.b16 %v632
        %v680 = vunpack.c.h.b16 %v632
        %v681 = vunpack.c.l.b16 %v633
        %v682 = vunpack.c.h.b16 %v633
        %v683 = vunpack.c.l.b16 %v634
        %v684 = vunpack.c.h.b16 %v634
        %v685 = vunpack.c.l.b16 %v635
        %v686 = vunpack.c.h.b16 %v635
        %v687 = vunpack.c.l.b16 %v636
        %v688 = vunpack.c.h.b16 %v636
        %v689 = vunpack.c.l.b16 %v637
        %v690 = vunpack.c.h.b16 %v637
        %v691 = vunpack.c.l.b16 %v638
        %v692 = vunpack.c.h.b16 %v638
        %v693 = vunpack.c.l.b16 %v639
        %v694 = vunpack.c.h.b16 %v639
        %v695 = vunpack.c.l.b16 %v640
        %v696 = vunpack.c.h.b16 %v640
        %v697 = vunpack.c.l.b16 %v641
        %v698 = vunpack.c.h.b16 %v641
        %v699 = vunpack.c.l.b16 %v642
        %v700 = vunpack.c.h.b16 %v642
        %v701 = vunpack.c.l.b16 %v643
        %v702 = vunpack.c.h.b16 %v643
        %v703 = vunpack.c.l.b16 %v644
        %v704 = vunpack.c.h.b16 %v644
        %v705 = vpack.c.b16 %v675, %v673
        %v706 = vpack.c.b16 %v676, %v674
        %v707 = vpack.c.b16 %v679, %v677
        %v708 = vpack.c.b16 %v680, %v678
        %v709 = vpack.c.b16 %v683, %v681
        %v710 = vpack.c.b16 %v684, %v682
        %v711 = vpack.c.b16 %v687, %v685
        %v712 = vpack.c.b16 %v688, %v686
        %v713 = vpack.c.b16 %v691, %v689
        %v714 = vpack.c.b16 %v692, %v690
        %v715 = vpack.c.b16 %v695, %v693
        %v716 = vpack.c.b16 %v696, %v694
        %v717 = vpack.c.b16 %v699, %v697
        %v718 = vpack.c.b16 %v700, %v698
        %v719 = vpack.c.b16 %v703, %v701
        %v720 = vpack.c.b16 %v704, %v702
        %737 = vmatprep.subr.bf16.mxu0 %v706
        %738 = vmatpush1.bf16.msra.mxu0 %v705
        %739 = vmatprep.subr.bf16.mxu0 %v708
        %740 = vmatpush1.bf16.msra.mxu0 %v707
        %741 = vmatprep.subr.bf16.mxu0 %v710
        %742 = vmatpush1.bf16.msra.mxu0 %v709
        %743 = vmatprep.subr.bf16.mxu0 %v712
        %744 = vmatpush1.bf16.msra.mxu0 %v711
        %745 = vmatprep.subr.bf16.mxu0 %v714
        %746 = vmatpush1.bf16.msra.mxu0 %v713
        %747 = vmatprep.subr.bf16.mxu0 %v716
        %748 = vmatpush1.bf16.msra.mxu0 %v715
        %749 = vmatprep.subr.bf16.mxu0 %v718
        %750 = vmatpush1.bf16.msra.mxu0 %v717
        %751 = vmatprep.subr.bf16.mxu0 %v720
        %752 = vmatpush1.bf16.msra.mxu0 %v719
        %753 = vmatprep.subr.bf16.mxu0 0
        %754 = vmatpush1.bf16.msra.mxu0 0
        %755 = vmatprep.subr.bf16.mxu0 0
        %756 = vmatpush1.bf16.msra.mxu0 0
        %757 = vmatprep.subr.bf16.mxu0 0
        %758 = vmatpush1.bf16.msra.mxu0 0
        %759 = vmatprep.subr.bf16.mxu0 0
        %760 = vmatpush1.bf16.msra.mxu0 0
        %761 = vmatprep.subr.bf16.mxu0 0
        %762 = vmatpush1.bf16.msra.mxu0 0
        %763 = vmatprep.subr.bf16.mxu0 0
        %764 = vmatpush1.bf16.msra.mxu0 0
        %765 = vmatprep.subr.bf16.mxu0 0
        %766 = vmatpush1.bf16.msra.mxu0 0
        %767 = vmatprep.subr.bf16.mxu0 0
        %768 = vmatpush1.bf16.msra.mxu0 0
        %769 = vmatprep.mubr.bf16.mxu0 0
        %770 = vmatmul.mubr.bf16.gmra.mrb[0].mxu0 %v625
        %v771 = vpop.f32.mrb[0].mxu0
        %v772 = vpop.f32.mrb[0].mxu0
        %v773 = vpop.f32.mrb[0].mxu0
        %v774 = vadd.f32 %v650, %v773
        %v775 = vpop.f32.mrb[0].mxu0
        %v776 = vadd.f32 %v654, %v775
        %777 = vmatprep.mubr.bf16.mxu0 0
        %778 = vmatmul.mubr.bf16.gmra.mrb[0].mxu0 %v626
        %v779 = vpop.f32.mrb[0].mxu0
        %v780 = vadd.f32 %v650, %v779
        %v781 = vpop.f32.mrb[0].mxu0
        %v782 = vadd.f32 %v654, %v781
        %v783 = vpop.f32.mrb[0].mxu0
        %v784 = vadd.f32 %v650, %v783
        %v785 = vpop.f32.mrb[0].mxu0
        %v786 = vadd.f32 %v654, %v785
        %787 = vmatprep.mubr.bf16.mxu0 0
        %788 = vmatmul.mubr.bf16.gmra.mrb[0].mxu0 %v627
        %v789 = vpop.f32.mrb[0].mxu0
        %v790 = vadd.f32 %v650, %v789
        %v791 = vpop.f32.mrb[0].mxu0
        %v792 = vadd.f32 %v654, %v791
        %v793 = vpop.f32.mrb[0].mxu0
        %v794 = vadd.f32 %v650, %v793
        %v795 = vpop.f32.mrb[0].mxu0
        %v796 = vadd.f32 %v654, %v795
        %797 = vmatprep.mubr.bf16.mxu0 0
        %798 = vmatmul.mubr.bf16.gmra.mrb[0].mxu0 %v628
        %v799 = vpop.f32.mrb[0].mxu0
        %v800 = vadd.f32 %v650, %v799
        %v801 = vpop.f32.mrb[0].mxu0
        %v802 = vadd.f32 %v654, %v801
        %v803 = vpop.f32.mrb[0].mxu0
        %v804 = vpop.f32.mrb[0].mxu0
        %805 = vdwg.mxu0
        %v806 = vxor.u32 %v776, 2147483648
        %v807 = vxor.u32 %v782, 2147483648
        %v808 = vxor.u32 %v786, 2147483648
        %v809 = vxor.u32 %v792, 2147483648
        %v810 = vxor.u32 %v796, 2147483648
        %v811 = vxor.u32 %v802, 2147483648
        %v812 = vmul.f32 %v806, 1.442695
        %v813 = vpow.pop %v812
        %v814 = vmul.f32 %v807, 1.442695
        %v815 = vpow.pop %v814
        %v816 = vmul.f32 %v808, 1.442695
        %v817 = vpow.pop %v816
        %v818 = vmul.f32 %v809, 1.442695
        %v819 = vpow.pop %v818
        %v820 = vmul.f32 %v810, 1.442695
        %v821 = vpow.pop %v820
        %v822 = vmul.f32 %v811, 1.442695
        %v823 = vpow.pop %v822
        %v824 = vadd.f32 %v813, 1.0
        %v825 = vadd.f32 %v815, 1.0
        %v826 = vadd.f32 %v817, 1.0
        %v827 = vadd.f32 %v819, 1.0
        %v828 = vadd.f32 %v821, 1.0
        %v829 = vadd.f32 %v823, 1.0
        %v830 = vrcp.pop %v824
        %v831 = vmul.f32 1.0, %v830
        %v832 = vrcp.pop %v825
        %v833 = vmul.f32 1.0, %v832
        %v834 = vrcp.pop %v826
        %v835 = vmul.f32 1.0, %v834
        %v836 = vrcp.pop %v827
        %v837 = vmul.f32 1.0, %v836
        %v838 = vrcp.pop %v828
        %v839 = vmul.f32 1.0, %v838
        %v840 = vrcp.pop %v829
        %v841 = vmul.f32 1.0, %v840
        %v842 = vmul.f32 %v774, %v831
        %v843 = vmul.f32 %v780, %v833
        %v844 = vmul.f32 %v784, %v835
        %v845 = vmul.f32 %v790, %v837
        %v846 = vmul.f32 %v794, %v839
        %v847 = vmul.f32 %v800, %v841
        %v848 = vsel %vm599, 1, 0
        %v849 = vsel %vm600, 1, 0
        %v850 = vsel %vm601, 1, 0
        %v851 = vsel %vm602, 1, 0
        %v852 = vsel %vm603, 1, 0
        %v853 = vsel %vm604, 1, 0
        %v854 = vcvt.s32.f32 %v848
        %v855 = vcvt.s32.f32 %v849
        %v856 = vcvt.s32.f32 %v850
        %v857 = vcvt.s32.f32 %v851
        %v858 = vcvt.s32.f32 %v852
        %v859 = vcvt.s32.f32 %v853
        %v860 = vmul.f32 %v842, %v854
        %v861 = vmul.f32 %v843, %v855
        %v862 = vmul.f32 %v844, %v856
        %v863 = vmul.f32 %v845, %v857
        %v864 = vmul.f32 %v846, %v858
        %v865 = vmul.f32 %v847, %v859
        %v866 = vld [vmem:[%s6] sm:$0x7f]
        %v867 = vlaneseq
        %v868 = vshrl.u32 %v867, 7
        %v869 = vsub.s32 0, %v868
        %v870 = vrot.slane %v866, %v869
        %v871 = vmul.f32 %v860, %v870
        %v872 = vmul.f32 %v861, %v870
        %v873 = vmul.f32 %v862, %v870
        %v874 = vmul.f32 %v863, %v870
        %v875 = vmul.f32 %v864, %v870
        %v876 = vlaneseq
        %v877 = vshrl.u32 %v876, 7
        %v878 = vsub.s32 1, %v877
        %v879 = vrot.slane %v866, %v878
        %v880 = vmul.f32 %v860, %v879
        %v881 = vmul.f32 %v861, %v879
        %v882 = vmul.f32 %v862, %v879
        %v883 = vmul.f32 %v863, %v879
        %v884 = vmul.f32 %v864, %v879
        %vm890 = vcmask 1046528
        %v891 = vrot.slane %v880, 1
        %v892 = vrot.slane %v881, 1
        %v893 = vsel %vm890, %v891, %v892
        %v894 = vrot.slane %v882, 1
        %v895 = vsel %vm890, %v892, %v894
        %v896 = vrot.slane %v883, 1
        %v897 = vsel %vm890, %v894, %v896
        %v898 = vrot.slane %v884, 1
        %v899 = vsel %vm890, %v896, %v898
        %v905 = vadd.f32 %v871, %v893
        %v906 = vadd.f32 %v872, %v895
        %v907 = vadd.f32 %v873, %v897
        %v908 = vadd.f32 %v874, %v899
        %v909 = vadd.f32 %v875, %v898
        %v910 = vlaneseq
        %v911 = vshrl.u32 %v910, 7
        %v912 = vsub.s32 2, %v911
        %v913 = vrot.slane %v866, %v912
        %v914 = vmul.f32 %v860, %v913
        %v915 = vmul.f32 %v861, %v913
        %v916 = vmul.f32 %v862, %v913
        %v917 = vmul.f32 %v863, %v913
        %v918 = vmul.f32 %v864, %v913
        %vm924 = vcmask 1045504
        %v925 = vrot.slane %v914, 2
        %v926 = vrot.slane %v915, 2
        %v927 = vsel %vm924, %v925, %v926
        %v928 = vrot.slane %v916, 2
        %v929 = vsel %vm924, %v926, %v928
        %v930 = vrot.slane %v917, 2
        %v931 = vsel %vm924, %v928, %v930
        %v932 = vrot.slane %v918, 2
        %v933 = vsel %vm924, %v930, %v932
        %v939 = vadd.f32 %v905, %v927
        %v940 = vadd.f32 %v906, %v929
        %v941 = vadd.f32 %v907, %v931
        %v942 = vadd.f32 %v908, %v933
        %v943 = vadd.f32 %v909, %v932
        %v944 = vlaneseq
        %v945 = vshrl.u32 %v944, 7
        %v946 = vsub.s32 3, %v945
        %v947 = vrot.slane %v866, %v946
        %v948 = vmul.f32 %v861, %v947
        %v949 = vmul.f32 %v862, %v947
        %v950 = vmul.f32 %v863, %v947
        %v951 = vmul.f32 %v864, %v947
        %vm956 = vcmask 1044480
        %v957 = vrot.slane %v948, 3
        %v958 = vrot.slane %v949, 3
        %v959 = vsel %vm956, %v957, %v958
        %v960 = vrot.slane %v950, 3
        %v961 = vsel %vm956, %v958, %v960
        %v962 = vrot.slane %v951, 3
        %v963 = vsel %vm956, %v960, %v962
        %v969 = vadd.f32 %v939, %v957
        %v970 = vadd.f32 %v940, %v959
        %v971 = vadd.f32 %v941, %v961
        %v972 = vadd.f32 %v942, %v963
        %v973 = vadd.f32 %v943, %v962
        %v974 = vlaneseq
        %v975 = vshrl.u32 %v974, 7
        %v976 = vsub.s32 4, %v975
        %v977 = vrot.slane %v866, %v976
        %v978 = vmul.f32 %v861, %v977
        %v979 = vmul.f32 %v862, %v977
        %v980 = vmul.f32 %v863, %v977
        %v981 = vmul.f32 %v864, %v977
        %v982 = vmul.f32 %v865, %v977
        %vm988 = vcmask 1043456
        %v989 = vrot.slane %v978, 4
        %v990 = vrot.slane %v979, 4
        %v991 = vsel %vm988, %v989, %v990
        %v992 = vrot.slane %v980, 4
        %v993 = vsel %vm988, %v990, %v992
        %v994 = vrot.slane %v981, 4
        %v995 = vsel %vm988, %v992, %v994
        %v996 = vrot.slane %v982, 4
        %v997 = vsel %vm988, %v994, %v996
        %v1003 = vadd.f32 %v969, %v989
        %v1004 = vadd.f32 %v970, %v991
        %v1005 = vadd.f32 %v971, %v993
        %v1006 = vadd.f32 %v972, %v995
        %v1007 = vadd.f32 %v973, %v997
        %v1008 = vlaneseq
        %v1009 = vshrl.u32 %v1008, 7
        %v1010 = vsub.s32 5, %v1009
        %v1011 = vrot.slane %v866, %v1010
        %v1012 = vmul.f32 %v861, %v1011
        %v1013 = vmul.f32 %v862, %v1011
        %v1014 = vmul.f32 %v863, %v1011
        %v1015 = vmul.f32 %v864, %v1011
        %v1016 = vmul.f32 %v865, %v1011
        %vm1022 = vcmask 1042432
        %v1023 = vrot.slane %v1012, 5
        %v1024 = vrot.slane %v1013, 5
        %v1025 = vsel %vm1022, %v1023, %v1024
        %v1026 = vrot.slane %v1014, 5
        %v1027 = vsel %vm1022, %v1024, %v1026
        %v1028 = vrot.slane %v1015, 5
        %v1029 = vsel %vm1022, %v1026, %v1028
        %v1030 = vrot.slane %v1016, 5
        %v1031 = vsel %vm1022, %v1028, %v1030
        %v1037 = vadd.f32 %v1003, %v1023
        %v1038 = vadd.f32 %v1004, %v1025
        %v1039 = vadd.f32 %v1005, %v1027
        %v1040 = vadd.f32 %v1006, %v1029
        %v1041 = vadd.f32 %v1007, %v1031
        %v1042 = vlaneseq
        %v1043 = vshrl.u32 %v1042, 7
        %v1044 = vsub.s32 6, %v1043
        %v1045 = vrot.slane %v866, %v1044
        %v1046 = vmul.f32 %v861, %v1045
        %v1047 = vmul.f32 %v862, %v1045
        %v1048 = vmul.f32 %v863, %v1045
        %v1049 = vmul.f32 %v864, %v1045
        %v1050 = vmul.f32 %v865, %v1045
        %vm1056 = vcmask 1041408
        %v1057 = vrot.slane %v1046, 6
        %v1058 = vrot.slane %v1047, 6
        %v1059 = vsel %vm1056, %v1057, %v1058
        %v1060 = vrot.slane %v1048, 6
        %v1061 = vsel %vm1056, %v1058, %v1060
        %v1062 = vrot.slane %v1049, 6
        %v1063 = vsel %vm1056, %v1060, %v1062
        %v1064 = vrot.slane %v1050, 6
        %v1065 = vsel %vm1056, %v1062, %v1064
        %v1071 = vadd.f32 %v1037, %v1057
        %v1072 = vadd.f32 %v1038, %v1059
        %v1073 = vadd.f32 %v1039, %v1061
        %v1074 = vadd.f32 %v1040, %v1063
        %v1075 = vadd.f32 %v1041, %v1065
        %v1076 = vld [vmem:[%s7] sm:$0x1]
        %v1078 = vlaneseq
        %v1079 = vshrl.u32 %v1078, 7
        %v1080 = vsub.s32 0, %v1079
        %v1081 = vrot.slane %v1076, %v1080
        %v1083 = vadd.f32 %v1071, %v1081
        %v1084 = vadd.f32 %v1072, %v1081
        %v1085 = vadd.f32 %v1073, %v1081
        %v1086 = vadd.f32 %v1074, %v1081
        %v1087 = vadd.f32 %v1075, %v1081
        %v1088 = vxor.u32 %v1083, 2147483648
        %v1089 = vxor.u32 %v1084, 2147483648
        %v1090 = vxor.u32 %v1085, 2147483648
        %v1091 = vxor.u32 %v1086, 2147483648
        %v1092 = vxor.u32 %v1087, 2147483648
        %v1093 = vmul.f32 %v1088, 1.442695
        %v1094 = vpow.pop %v1093
        %v1095 = vmul.f32 %v1089, 1.442695
        %v1096 = vpow.pop %v1095
        %v1097 = vmul.f32 %v1090, 1.442695
        %v1098 = vpow.pop %v1097
        %v1099 = vmul.f32 %v1091, 1.442695
        %v1100 = vpow.pop %v1099
        %v1101 = vmul.f32 %v1092, 1.442695
        %v1102 = vpow.pop %v1101
        %v1103 = vadd.f32 %v1094, 1.0
        %v1104 = vadd.f32 %v1096, 1.0
        %v1105 = vadd.f32 %v1098, 1.0
        %v1106 = vadd.f32 %v1100, 1.0
        %v1107 = vadd.f32 %v1102, 1.0
        %v1108 = vrcp.pop %v1103
        %v1109 = vmul.f32 1.0, %v1108
        %v1110 = vrcp.pop %v1104
        %v1111 = vmul.f32 1.0, %v1110
        %v1112 = vrcp.pop %v1105
        %v1113 = vmul.f32 1.0, %v1112
        %v1114 = vrcp.pop %v1106
        %v1115 = vmul.f32 1.0, %v1114
        %v1116 = vrcp.pop %v1107
        %v1117 = vmul.f32 1.0, %v1116
        %v1118 = vmul.f32 %v1083, %v1109
        %v1119 = vmul.f32 %v1084, %v1111
        %v1120 = vmul.f32 %v1085, %v1113
        %v1121 = vmul.f32 %v1086, %v1115
        %v1122 = vmul.f32 %v1087, %v1117
        %v1123 = vpack.c.bf16 %v1119, %v1118
        %v1124 = vpack.c.bf16 %v1121, %v1120
        %v1125 = vpack.c.bf16 %v1122, %v1122
        %v1126 = vld [vmem:[#allocation12] sm:$0xf]
        %v1127 = vld [vmem:[#allocation12 + $0x4] sm:$0xf]
        %v1128 = vld [vmem:[#allocation12 + $0x8] sm:$0xf]
        %v1129 = vld [vmem:[#allocation12 + $0xc] sm:$0xf]
        %v1130 = vld [vmem:[#allocation12 + $0x10] sm:$0xf]
        %v1131 = vld [vmem:[#allocation12 + $0x14] sm:$0xf]
        %v1132 = vld [vmem:[#allocation12 + $0x18] sm:$0xf]
        %v1133 = vld [vmem:[#allocation12 + $0x1c] sm:$0xf]
        %v1134 = vld [vmem:[#allocation12 + $0x20] sm:$0xf]
        %v1135 = vld [vmem:[#allocation12 + $0x24] sm:$0xf]
        %v1136 = vld [vmem:[#allocation12 + $0x28] sm:$0xf]
        %v1137 = vld [vmem:[#allocation12 + $0x2c] sm:$0xf]
        %v1138 = vld [vmem:[#allocation12 + $0x30] sm:$0xf]
        %v1139 = vld [vmem:[#allocation12 + $0x34] sm:$0xf]
        %v1140 = vld [vmem:[#allocation12 + $0x38] sm:$0xf]
        %v1141 = vld [vmem:[#allocation12 + $0x3c] sm:$0xf]
        %v1142 = vld [vmem:[%s9] sm:$0x1]
        %v1144 = vlaneseq
        %v1145 = vshrl.u32 %v1144, 7
        %v1146 = vsub.s32 0, %v1145
        %v1147 = vrot.slane %v1142, %v1146
        %vm1149 = vsmask.f32 5376
        %v1151 = vshrl.u32 %v1123, 16
        %v1153 = vrot.slane %v1151, 2
        %v1154 = vshll.u32 %v1123, 16
        %v1156 = vrot.slane %v1154, 3
        %v1157 = vor.u32 %v1153, %v1156
        %v1159 = vshrl.u32 %v1124, 16
        %v1161 = vrot.slane %v1159, 2
        %v1162 = vshll.u32 %v1124, 16
        %v1164 = vrot.slane %v1162, 3
        %v1165 = vor.u32 %v1161, %v1164
        %v1166 = vsel %vm1149, %v1157, %v1165
        %v1168 = vshrl.u32 %v1125, 16
        %v1170 = vrot.slane %v1168, 2
        %v1171 = vshll.u32 %v1125, 16
        %v1173 = vrot.slane %v1171, 3
        %v1174 = vor.u32 %v1170, %v1173
        %v1175 = vsel %vm1149, %v1165, %v1174
        %v1194 = vunpack.c.l.b16 %v1126
        %v1195 = vunpack.c.l.b16 %v1127
        %v1196 = vunpack.c.l.b16 %v1128
        %v1197 = vunpack.c.l.b16 %v1129
        %v1198 = vunpack.c.l.b16 %v1130
        %v1199 = vunpack.c.l.b16 %v1131
        %v1200 = vunpack.c.l.b16 %v1132
        %v1201 = vunpack.c.l.b16 %v1133
        %v1202 = vunpack.c.l.b16 %v1134
        %v1203 = vunpack.c.l.b16 %v1135
        %v1204 = vunpack.c.l.b16 %v1136
        %v1205 = vunpack.c.l.b16 %v1137
        %v1206 = vunpack.c.l.b16 %v1138
        %v1207 = vunpack.c.l.b16 %v1139
        %v1208 = vunpack.c.l.b16 %v1140
        %v1209 = vunpack.c.l.b16 %v1141
        %v1210 = vpack.c.b16 %v1195, %v1194
        %v1211 = vpack.c.b16 %v1197, %v1196
        %v1212 = vpack.c.b16 %v1199, %v1198
        %v1213 = vpack.c.b16 %v1201, %v1200
        %v1214 = vpack.c.b16 %v1203, %v1202
        %v1215 = vpack.c.b16 %v1205, %v1204
        %v1216 = vpack.c.b16 %v1207, %v1206
        %v1217 = vpack.c.b16 %v1209, %v1208
        %1226 = vmatprep.subr.bf16.mxu0 0
        %1227 = vmatpush1.bf16.msra.mxu0 %v1210
        %1228 = vmatprep.subr.bf16.mxu0 0
        %1229 = vmatpush1.bf16.msra.mxu0 %v1211
        %1230 = vmatprep.subr.bf16.mxu0 0
        %1231 = vmatpush1.bf16.msra.mxu0 %v1212
        %1232 = vmatprep.subr.bf16.mxu0 0
        %1233 = vmatpush1.bf16.msra.mxu0 %v1213
        %1234 = vmatprep.subr.bf16.mxu0 0
        %1235 = vmatpush1.bf16.msra.mxu0 %v1214
        %1236 = vmatprep.subr.bf16.mxu0 0
        %1237 = vmatpush1.bf16.msra.mxu0 %v1215
        %1238 = vmatprep.subr.bf16.mxu0 0
        %1239 = vmatpush1.bf16.msra.mxu0 %v1216
        %1240 = vmatprep.subr.bf16.mxu0 0
        %1241 = vmatpush1.bf16.msra.mxu0 %v1217
        %1242 = vmatprep.subr.bf16.mxu0 0
        %1243 = vmatpush1.bf16.msra.mxu0 0
        %1244 = vmatprep.subr.bf16.mxu0 0
        %1245 = vmatpush1.bf16.msra.mxu0 0
        %1246 = vmatprep.subr.bf16.mxu0 0
        %1247 = vmatpush1.bf16.msra.mxu0 0
        %1248 = vmatprep.subr.bf16.mxu0 0
        %1249 = vmatpush1.bf16.msra.mxu0 0
        %1250 = vmatprep.subr.bf16.mxu0 0
        %1251 = vmatpush1.bf16.msra.mxu0 0
        %1252 = vmatprep.subr.bf16.mxu0 0
        %1253 = vmatpush1.bf16.msra.mxu0 0
        %1254 = vmatprep.subr.bf16.mxu0 0
        %1255 = vmatpush1.bf16.msra.mxu0 0
        %1256 = vmatprep.subr.bf16.mxu0 0
        %1257 = vmatpush1.bf16.msra.mxu0 0
        %1258 = vmatprep.mubr.bf16.mxu0 0
        %1259 = vmatmul.mubr.bf16.gmra.mrb[0].mxu0 %v1166
        %v1260 = vpop.f32.mrb[0].mxu0
        %v1261 = vadd.f32 %v1147, %v1260
        %v1262 = vpop.f32.mrb[0].mxu0
        %v1263 = vpop.f32.mrb[0].mxu0
        %v1264 = vadd.f32 %v1147, %v1263
        %v1265 = vpop.f32.mrb[0].mxu0
        %1266 = vmatprep.mubr.bf16.mxu0 0
        %1267 = vmatmul.mubr.bf16.gmra.mrb[0].mxu0 %v1175
        %v1268 = vpop.f32.mrb[0].mxu0
        %v1269 = vadd.f32 %v1147, %v1268
        %v1270 = vpop.f32.mrb[0].mxu0
        %v1271 = vpop.f32.mrb[0].mxu0
        %v1272 = vadd.f32 %v1147, %v1271
        %v1273 = vpop.f32.mrb[0].mxu0
        %1274 = vdwg.mxu0
        %v1275 = vstv %s525
        %v1276 = vadd.s32 %v1275, %v561
        %v1277 = vadd.s32 %v1275, %v562
        %v1278 = vadd.s32 %v1275, %v563
        %v1279 = vadd.s32 %v1275, %v564
        %vm1280 = vcmp.lt.s32.totalorder %v1276, %v578
        %vm1281 = vcmp.lt.s32.totalorder %v1277, %v578
        %vm1282 = vcmp.lt.s32.totalorder %v1278, %v578
        %vm1283 = vcmp.lt.s32.totalorder %v1279, %v578
        %v1284 = vsel %vm1280, 1, 0
        %v1285 = vsel %vm1281, 1, 0
        %v1286 = vsel %vm1282, 1, 0
        %v1287 = vsel %vm1283, 1, 0
        %v1288 = vcvt.s32.f32 %v1284
        %v1289 = vcvt.s32.f32 %v1285
        %v1290 = vcvt.s32.f32 %v1286
        %v1291 = vcvt.s32.f32 %v1287
        %v1292 = vmul.f32 %v1261, %v1288
        %v1293 = vmul.f32 %v1264, %v1289
        %v1294 = vmul.f32 %v1269, %v1290
        %v1295 = vmul.f32 %v1272, %v1291
        %1296 = vst [vmem:[%s511] sm:$0xff] %v1292
        %1297 = vst [vmem:[%s511 + $0x8] sm:$0xff] %v1293
        %1298 = vst [vmem:[%s511 + $0x10] sm:$0xff] %v1294
        %1299 = vst [vmem:[%s511 + $0x18] sm:$0xff] %v1295
        %s1300 = sand.u32 %s283, 1
        %s1301 = scalar_lea.sflag [#allocation6], %s1300
        %s1302 = sand.u32 %s283, 1
        %s1303 = smul.addr %s1302, 32
        %s1304 = scalar_lea.vmem [#allocation13], %s1303
        // Predicated region
        $region77: #{tpu_custom_call.1} parent=55 // pred_check
          %p1305 = pneg %p293
        $region78: #{tpu_custom_call.1} parent=55 // pred_check_branch
          %1307 = sbr.rel (%p1305) target = $region80
        $region79: #{tpu_custom_call.1} parent=55 // pred_region
          %s1308 = smul.u32 4, %s40
          %s1310 = ssub.s32 512, 512
          %1311 = vsyncadd %s1301, %s1310
          %s1312 = smul.addr %s39, 8
          %s1313 = sadd.s32 %s1308, %s1312
          %s1314 = smul.addr %s1313, 128
          %s1315 = scalar_lea.hbm %s10, %s1314
          %s1316 = sshll.u32 %s1304, 4
          %s1317 = int_to_ptr.vmem [resolvable:$true] %s1316
          %1322 = dma.vmem_to_hbm [thread:$0]  %s1317, 512, %s1315, %s1301, 128, 128, 8
        $region80: #{tpu_custom_call.1} parent=55 // pred_fallthru
          _
      $region56: #{tpu_custom_call.1} parent=5 // pred_fallthru
        _
      %p1323 = scmp.le.s32.totalorder 2, %s30
      // Predicated region
      $region81: #{tpu_custom_call.1} parent=5 // pred_check
        %p1324 = pneg %p1323
      $region82: #{tpu_custom_call.1} parent=5 // pred_check_branch
        %1326 = sbr.rel (%p1324) target = $region84
      $region83: #{tpu_custom_call.1} parent=5 // pred_region
        %s1327 = ssub.s32 %s30, 2
        // Predicated region
        $region85: #{tpu_custom_call.1} parent=83 // pred_check
          %p1328 = pneg %p299
        $region86: #{tpu_custom_call.1} parent=83 // pred_check_branch
          %1330 = sbr.rel (%p1328) target = $region88
        $region87: #{tpu_custom_call.1} parent=83 // pred_region
          %s1331 = sand.u32 %s284, 1
          %s1332 = scalar_lea.sflag [#allocation6], %s1331
          %s1333 = sand.u32 %s284, 1
          %s1334 = smul.addr %s1333, 32
          %s1335 = scalar_lea.vmem [#allocation13], %s1334
          %1336 = dma.done %s1332, 512
        $region88: #{tpu_custom_call.1} parent=83 // pred_fallthru
          _
      $region84: #{tpu_custom_call.1} parent=5 // pred_fallthru
        _
    $region6: #{tpu_custom_call.1} parent=1 // loop_footer
      %s34 = sadd.s32 1, %s30
    $region7: #{tpu_custom_call.1} parent=1 // loop_footer_branch
      %29 = sbr.rel target = $region3
    $region8: #{tpu_custom_call.1} parent=1 // loop_exit
      _
    %1337 = vsyncpa [#allocation5], 1
    %s1338 = scalar_lea.sflag [#allocation5], 1
    %1339 = vsyncpa %s1338, 1
    %1340 = vsyncpa [#allocation8], 1
    %s1341 = scalar_lea.sflag [#allocation8], 1
    %1342 = vsyncpa %s1341, 1
    %1343 = vsyncpa [#allocation11], 1
    %1344 = vsyncpa [#allocation6], 1
    %s1345 = scalar_lea.sflag [#allocation6], 1
    %1346 = vsyncpa %s1345, 1

</llo_original>
